<compile_context>
chip_gen: v6e
topology: v6e:2x2x1
jax: 0.10.0
libtpu: 0.0.40
codegen_flags: <defaults>
</compile_context>

<pallas_src>
import functools
import numpy as np
import jax
import jax.numpy as jnp
from jax.experimental import pallas as pl
from jax.experimental.pallas import tpu as pltpu


# ---------------------------------------------------------------------------
# Fused forward kernel (all layers + unembed) for one batch element.
# ---------------------------------------------------------------------------
def fused_forward_kernel(x_ref, wqkv_ref, wo_ref, win_ref, bin_ref,
                         wout_ref, bout_ref, wu_ref, o_ref,
                         *, num_layers, num_heads, d_head):
    """Process one batch element through every transformer block + unembed.

    x_ref:    (1, P, D)
    wqkv_ref: (L, D, 3*H*dH)   fused, pre-transposed Q|K|V projection
    wo_ref:   (L, H*dH, D)     pre-transposed output projection
    win_ref:  (L, D, d_mlp)    pre-transposed MLP in
    bin_ref:  (L, 1, d_mlp)
    wout_ref: (L, d_mlp, D)    pre-transposed MLP out
    bout_ref: (L, 1, D)
    wu_ref:   (D, Vp)          vocab padded to a multiple of 128 lanes
    o_ref:    (1, P, Vp)       lane-dense logits output
    """
    H, dH = num_heads, d_head
    scale = 1.0 / np.sqrt(d_head)

    x = x_ref[0]                                                     # (P, D)

    for l in range(num_layers):                                      # static unroll
        # ---- attention: one fused QKV matmul --------------------------------
        qkv = jnp.dot(x, wqkv_ref[l],
                      preferred_element_type=jnp.float32)            # (P, 3*H*dH)

        z_heads = []
        for h in range(H):                                           # static unroll
            q_h = qkv[:, h * dH:(h + 1) * dH]                        # (P, dH)
            k_h = qkv[:, (H + h) * dH:(H + h + 1) * dH]              # (P, dH)
            v_h = qkv[:, (2 * H + h) * dH:(2 * H + h + 1) * dH]      # (P, dH)

            # scores[q, p] = sum_e q_h[q, e] * k_h[p, e]   (no causal mask)
            s = jnp.einsum('qe,ke->qk', q_h, k_h,
                           preferred_element_type=jnp.float32) * scale
            s = s - jnp.max(s, axis=-1, keepdims=True)
            e = jnp.exp(s)
            # NOTE: approx=True would move this to the EUP vrcp slot for free,
            # but exact reciprocal is kept to satisfy the 1e-4 tolerance check.
            a = e * pl.reciprocal(jnp.sum(e, axis=-1, keepdims=True),
                                  approx=False)
            z_heads.append(jnp.dot(a, v_h,
                                   preferred_element_type=jnp.float32))

        z_flat = jnp.concatenate(z_heads, axis=-1)                   # (P, H*dH)
        attn = jnp.dot(z_flat, wo_ref[l],
                       preferred_element_type=jnp.float32)           # (P, D)
        x = x + attn                                                 # residual

        # ---- MLP -------------------------------------------------------------
        hmid = jnp.dot(x, win_ref[l],
                       preferred_element_type=jnp.float32) + bin_ref[l]
        hmid = jnp.maximum(hmid, 0.0)                                # relu
        mlp_out = jnp.dot(hmid, wout_ref[l],
                          preferred_element_type=jnp.float32) + bout_ref[l]
        x = x + mlp_out                                              # residual

    # ---- unembed (lane-dense padded output) ---------------------------------
    o_ref[0] = jnp.dot(x, wu_ref[...], preferred_element_type=jnp.float32)


# ---------------------------------------------------------------------------
# pallas_call wrapper
# ---------------------------------------------------------------------------
def fused_forward(x_emb, stacked, w_u_padded, *, num_layers, num_heads, d_head):
    B, P, D = x_emb.shape
    wqkv, wo, win, bin_, wout, bout = stacked
    Vp = w_u_padded.shape[-1]

    def full(arr):
        return pl.BlockSpec(arr.shape, lambda b: (0,) * arr.ndim)

    kern = functools.partial(fused_forward_kernel, num_layers=num_layers,
                             num_heads=num_heads, d_head=d_head)

    return pl.pallas_call(
        kern,
        out_shape=jax.ShapeDtypeStruct((B, P, Vp), jnp.float32),
        grid_spec=pltpu.PrefetchScalarGridSpec(
            num_scalar_prefetch=0,
            grid=(B,),
            in_specs=[
                pl.BlockSpec((1, P, D), lambda b: (b, 0, 0)),        # x
                full(wqkv), full(wo), full(win), full(bin_),
                full(wout), full(bout), full(w_u_padded),
            ],
            out_specs=pl.BlockSpec((1, P, Vp), lambda b: (b, 0, 0)),
        ),
        compiler_params=pltpu.CompilerParams(
            dimension_semantics=("parallel",)),                      # keeps both v7x TCs busy
    )(x_emb, wqkv, wo, win, bin_, wout, bout, w_u_padded)


# ---------------------------------------------------------------------------
# Host-side weight preparation (one-time transposes / stacking — no in-kernel .T)
# ---------------------------------------------------------------------------
def prepare_stacked_weights(params):
    wqkv_l, wo_l, win_l, bin_l, wout_l, bout_l = [], [], [], [], [], []
    for bp in params["blocks"]:
        H, dH, D = bp["W_Q"].shape

        def to_cols(w):  # (H, dH, D) -> (D, H*dH), head-major columns
            return jnp.transpose(w, (2, 0, 1)).reshape(D, H * dH)

        wqkv_l.append(jnp.concatenate(
            [to_cols(bp["W_Q"]), to_cols(bp["W_K"]), to_cols(bp["W_V"])],
            axis=-1))                                                # (D, 3*H*dH)
        wo_l.append(bp["W_O"].T)                                     # (H*dH, D)
        win_l.append(bp["W_in"].T)                                   # (D, d_mlp)
        bin_l.append(bp["b_in"])                                     # (1, d_mlp)
        wout_l.append(bp["W_out"].T)                                 # (d_mlp, D)
        bout_l.append(bp["b_out"])                                   # (1, D)

    stack = lambda xs: jnp.stack(xs, axis=0)
    return (stack(wqkv_l), stack(wo_l), stack(win_l),
            stack(bin_l), stack(wout_l), stack(bout_l))


# ---------------------------------------------------------------------------
# Model (glue in plain JAX, hot path in one fused Pallas kernel)
# ---------------------------------------------------------------------------
def init_params(key, *, num_layers, d_vocab, d_model, d_mlp, d_head,
                num_heads, num_ctx):
    keys = jax.random.split(key, 3 + num_layers)
    p = {}
    p["W_E"] = jax.random.normal(keys[0], (d_model, d_vocab)) / np.sqrt(d_model)
    p["W_pos"] = jax.random.normal(keys[1], (num_ctx, d_model)) / np.sqrt(d_model)
    p["W_U"] = jax.random.normal(keys[2], (d_model, d_vocab)) / np.sqrt(d_vocab)
    blocks = []
    for l in range(num_layers):
        lk = jax.random.split(keys[3 + l], 6)
        blocks.append(dict(
            W_K=jax.random.normal(lk[0], (num_heads, d_head, d_model)) / np.sqrt(d_model),
            W_Q=jax.random.normal(lk[1], (num_heads, d_head, d_model)) / np.sqrt(d_model),
            W_V=jax.random.normal(lk[2], (num_heads, d_head, d_model)) / np.sqrt(d_model),
            W_O=jax.random.normal(lk[3], (d_model, d_head * num_heads)) / np.sqrt(d_model),
            W_in=jax.random.normal(lk[4], (d_mlp, d_model)) / np.sqrt(d_model),
            b_in=jnp.zeros((1, d_mlp)),
            W_out=jax.random.normal(lk[5], (d_model, d_mlp)) / np.sqrt(d_model),
            b_out=jnp.zeros((1, d_model)),
        ))
    p["blocks"] = blocks
    return jax.tree_util.tree_map(lambda a: a.astype(jnp.float32), p)


def true_model_forward(tokens, params, *, num_heads, d_head):
    # Embed: W_E[:, tokens] then 'dbp->bpd'  ==  W_E.T indexed by token ids (gather glue).
    x = jnp.take(params["W_E"].T, tokens, axis=0)                    # (B, P, D)
    # Positional embedding add (glue).
    x = x + params["W_pos"][: tokens.shape[-1]]

    # Host-side weight prep (pre-transpose + stack across layers).
    stacked = prepare_stacked_weights(params)
    D, V = params["W_U"].shape
    Vp = max(128, ((V + 127) // 128) * 128)                          # lane-dense output
    w_u_padded = jnp.zeros((D, Vp), jnp.float32).at[:, :V].set(params["W_U"])

    logits_padded = fused_forward(
        x, stacked, w_u_padded,
        num_layers=len(params["blocks"]), num_heads=num_heads, d_head=d_head)
    return logits_padded[:, :, :V]


# ---------------------------------------------------------------------------
# Pure-JAX reference (mirrors the PyTorch einsums exactly) for a sanity check.
# ---------------------------------------------------------------------------
def reference_forward(tokens, params, *, num_heads, d_head):
    x = jnp.take(params["W_E"].T, tokens, axis=0)
    x = x + params["W_pos"][: tokens.shape[-1]]
    for bp in params["blocks"]:
        k = jnp.einsum("ihd,bpd->biph", bp["W_K"], x)
        q = jnp.einsum("ihd,bpd->biph", bp["W_Q"], x)
        v = jnp.einsum("ihd,bpd->biph", bp["W_V"], x)
        s = jnp.einsum("biph,biqh->biqp", k, q) / np.sqrt(d_head)
        a = jax.nn.softmax(s, axis=-1)
        z = jnp.einsum("biph,biqp->biqh", v, a)
        B, H, P, dH = z.shape
        z_flat = jnp.transpose(z, (0, 2, 1, 3)).reshape(B, P, H * dH)
        attn_out = jnp.einsum("df,bqf->bqd", bp["W_O"], z_flat)
        x = x + attn_out
        h = jnp.einsum("md,bpd->bpm", bp["W_in"], x) + bp["b_in"][0]
        h = jnp.maximum(h, 0.0)
        mlp_out = jnp.einsum("dm,bpm->bpd", bp["W_out"], h) + bp["b_out"][0]
        x = x + mlp_out
    return x @ params["W_U"]


# ---------------------------------------------------------------------------
if __name__ == "__main__":
    # Small config consistent with the module's constructor.
    num_layers, d_vocab, d_model = 2, 16, 32
    d_mlp, d_head, num_heads, num_ctx = 64, 8, 4, 8
    batch, seq = 2, 8

    key = jax.random.PRNGKey(0)
    pkey, tkey = jax.random.split(key)
    params = init_params(pkey, num_layers=num_layers, d_vocab=d_vocab,
                         d_model=d_model, d_mlp=d_mlp, d_head=d_head,
                         num_heads=num_heads, num_ctx=num_ctx)
    tokens = jax.random.randint(tkey, (batch, seq), 0, d_vocab, dtype=jnp.int32)

    logits = true_model_forward(tokens, params, num_heads=num_heads, d_head=d_head)
    logits = jax.block_until_ready(logits)

    ref = reference_forward(tokens, params, num_heads=num_heads, d_head=d_head)
    np.testing.assert_allclose(np.asarray(logits), np.asarray(ref),
                               rtol=1e-4, atol=1e-4)

    print("KERNEL_OK")
</pallas_src>

<mosaic_0001>
module attributes {stable_mosaic.version = 11 : i64} {
  func.func @fused_forward_kernel(%arg0: i32, %arg1: memref<1x8x32xf32, #tpu.memory_space<vmem>>, %arg2: memref<2x32x96xf32, #tpu.memory_space<vmem>>, %arg3: memref<2x32x32xf32, #tpu.memory_space<vmem>>, %arg4: memref<2x32x64xf32, #tpu.memory_space<vmem>>, %arg5: memref<2x1x64xf32, #tpu.memory_space<vmem>>, %arg6: memref<2x64x32xf32, #tpu.memory_space<vmem>>, %arg7: memref<2x1x32xf32, #tpu.memory_space<vmem>>, %arg8: memref<32x128xf32, #tpu.memory_space<vmem>>, %arg9: memref<1x8x128xf32, #tpu.memory_space<vmem>>) attributes {dimension_semantics = [#tpu.dimension_semantics<parallel>], iteration_bounds = array<i64: 2>, scalar_prefetch = 0 : i64, scratch_operands = 0 : i64, tpu.core_type = #tpu.core_type<tc>, window_params = [{transform_indices = @transform_0, window_bounds = array<i64: 1, 8, 32>}, {pipeline_mode = #tpu.pipeline_mode<synchronous>, transform_indices = @transform_1, window_bounds = array<i64: 2, 32, 96>}, {pipeline_mode = #tpu.pipeline_mode<synchronous>, transform_indices = @transform_2, window_bounds = array<i64: 2, 32, 32>}, {pipeline_mode = #tpu.pipeline_mode<synchronous>, transform_indices = @transform_3, window_bounds = array<i64: 2, 32, 64>}, {pipeline_mode = #tpu.pipeline_mode<synchronous>, transform_indices = @transform_4, window_bounds = array<i64: 2, 1, 64>}, {pipeline_mode = #tpu.pipeline_mode<synchronous>, transform_indices = @transform_5, window_bounds = array<i64: 2, 64, 32>}, {pipeline_mode = #tpu.pipeline_mode<synchronous>, transform_indices = @transform_6, window_bounds = array<i64: 2, 1, 32>}, {pipeline_mode = #tpu.pipeline_mode<synchronous>, transform_indices = @transform_7, window_bounds = array<i64: 32, 128>}, {transform_indices = @transform_8, window_bounds = array<i64: 1, 8, 128>}]} {
    %c0 = arith.constant 0 : index
    %c0_0 = arith.constant 0 : index
    %c0_1 = arith.constant 0 : index
    %0 = vector.load %arg1[%c0, %c0_0, %c0_1] : memref<1x8x32xf32, #tpu.memory_space<vmem>>, vector<1x8x32xf32>
    %1 = vector.shape_cast %0 : vector<1x8x32xf32> to vector<8x32xf32>
    %c0_2 = arith.constant 0 : index
    %c0_3 = arith.constant 0 : index
    %c0_4 = arith.constant 0 : index
    %2 = vector.load %arg2[%c0_2, %c0_3, %c0_4] : memref<2x32x96xf32, #tpu.memory_space<vmem>>, vector<1x32x96xf32>
    %3 = vector.shape_cast %2 : vector<1x32x96xf32> to vector<32x96xf32>
    %cst = arith.constant dense<0.000000e+00> : vector<8x96xf32>
    %4 = tpu.matmul %1, %3, %cst {dimension_numbers = #tpu.dot_dimension_numbers<[1], [0], [0], [1], [0, 0, 1, 1], [], []>} : vector<8x32xf32>, vector<32x96xf32>, vector<8x96xf32> -> vector<8x96xf32>
    %5 = vector.extract_strided_slice %4 {offsets = [0, 0], sizes = [8, 8], strides = [1, 1]} : vector<8x96xf32> to vector<8x8xf32>
    %6 = vector.extract_strided_slice %4 {offsets = [0, 32], sizes = [8, 8], strides = [1, 1]} : vector<8x96xf32> to vector<8x8xf32>
    %7 = vector.extract_strided_slice %4 {offsets = [0, 64], sizes = [8, 8], strides = [1, 1]} : vector<8x96xf32> to vector<8x8xf32>
    "tpu.trace_start"() <{level = 10 : i32, message = "qe,ke->qk"}> : () -> ()
    %cst_5 = arith.constant dense<0.000000e+00> : vector<8x8xf32>
    %8 = tpu.matmul %5, %6, %cst_5 {dimension_numbers = #tpu.dot_dimension_numbers<[1], [1], [0], [0], [0, 0, 1, 0], [], []>} : vector<8x8xf32>, vector<8x8xf32>, vector<8x8xf32> -> vector<8x8xf32>
    "tpu.trace_stop"() : () -> ()
    %cst_6 = arith.constant 0.353553385 : f32
    %9 = vector.broadcast %cst_6 : f32 to vector<8x8xf32>
    %10 = arith.mulf %8, %9 : vector<8x8xf32>
    %cst_7 = arith.constant dense<0xFF800000> : vector<8xf32>
    %11 = vector.multi_reduction <maximumf>, %10, %cst_7 [1] : vector<8x8xf32> to vector<8xf32>
    %12 = vector.shape_cast %11 : vector<8xf32> to vector<8x1xf32>
    %13 = vector.broadcast %12 : vector<8x1xf32> to vector<8x8xf32>
    %14 = arith.subf %10, %13 : vector<8x8xf32>
    %15 = math.exp %14 : vector<8x8xf32>
    %cst_8 = arith.constant dense<0.000000e+00> : vector<8xf32>
    %16 = vector.multi_reduction <add>, %15, %cst_8 [1] : vector<8x8xf32> to vector<8xf32>
    %17 = vector.shape_cast %16 : vector<8xf32> to vector<8x1xf32>
    %18 = tpu.reciprocal %17 : vector<8x1xf32> -> vector<8x1xf32>
    %19 = vector.broadcast %18 : vector<8x1xf32> to vector<8x8xf32>
    %20 = arith.mulf %15, %19 : vector<8x8xf32>
    %cst_9 = arith.constant dense<0.000000e+00> : vector<8x8xf32>
    %21 = tpu.matmul %20, %7, %cst_9 {dimension_numbers = #tpu.dot_dimension_numbers<[1], [0], [0], [1], [0, 0, 1, 1], [], []>} : vector<8x8xf32>, vector<8x8xf32>, vector<8x8xf32> -> vector<8x8xf32>
    %22 = vector.extract_strided_slice %4 {offsets = [0, 8], sizes = [8, 8], strides = [1, 1]} : vector<8x96xf32> to vector<8x8xf32>
    %23 = vector.extract_strided_slice %4 {offsets = [0, 40], sizes = [8, 8], strides = [1, 1]} : vector<8x96xf32> to vector<8x8xf32>
    %24 = vector.extract_strided_slice %4 {offsets = [0, 72], sizes = [8, 8], strides = [1, 1]} : vector<8x96xf32> to vector<8x8xf32>
    "tpu.trace_start"() <{level = 10 : i32, message = "qe,ke->qk"}> : () -> ()
    %cst_10 = arith.constant dense<0.000000e+00> : vector<8x8xf32>
    %25 = tpu.matmul %22, %23, %cst_10 {dimension_numbers = #tpu.dot_dimension_numbers<[1], [1], [0], [0], [0, 0, 1, 0], [], []>} : vector<8x8xf32>, vector<8x8xf32>, vector<8x8xf32> -> vector<8x8xf32>
    "tpu.trace_stop"() : () -> ()
    %cst_11 = arith.constant 0.353553385 : f32
    %26 = vector.broadcast %cst_11 : f32 to vector<8x8xf32>
    %27 = arith.mulf %25, %26 : vector<8x8xf32>
    %cst_12 = arith.constant dense<0xFF800000> : vector<8xf32>
    %28 = vector.multi_reduction <maximumf>, %27, %cst_12 [1] : vector<8x8xf32> to vector<8xf32>
    %29 = vector.shape_cast %28 : vector<8xf32> to vector<8x1xf32>
    %30 = vector.broadcast %29 : vector<8x1xf32> to vector<8x8xf32>
    %31 = arith.subf %27, %30 : vector<8x8xf32>
    %32 = math.exp %31 : vector<8x8xf32>
    %cst_13 = arith.constant dense<0.000000e+00> : vector<8xf32>
    %33 = vector.multi_reduction <add>, %32, %cst_13 [1] : vector<8x8xf32> to vector<8xf32>
    %34 = vector.shape_cast %33 : vector<8xf32> to vector<8x1xf32>
    %35 = tpu.reciprocal %34 : vector<8x1xf32> -> vector<8x1xf32>
    %36 = vector.broadcast %35 : vector<8x1xf32> to vector<8x8xf32>
    %37 = arith.mulf %32, %36 : vector<8x8xf32>
    %cst_14 = arith.constant dense<0.000000e+00> : vector<8x8xf32>
    %38 = tpu.matmul %37, %24, %cst_14 {dimension_numbers = #tpu.dot_dimension_numbers<[1], [0], [0], [1], [0, 0, 1, 1], [], []>} : vector<8x8xf32>, vector<8x8xf32>, vector<8x8xf32> -> vector<8x8xf32>
    %39 = vector.extract_strided_slice %4 {offsets = [0, 16], sizes = [8, 8], strides = [1, 1]} : vector<8x96xf32> to vector<8x8xf32>
    %40 = vector.extract_strided_slice %4 {offsets = [0, 48], sizes = [8, 8], strides = [1, 1]} : vector<8x96xf32> to vector<8x8xf32>
    %41 = vector.extract_strided_slice %4 {offsets = [0, 80], sizes = [8, 8], strides = [1, 1]} : vector<8x96xf32> to vector<8x8xf32>
    "tpu.trace_start"() <{level = 10 : i32, message = "qe,ke->qk"}> : () -> ()
    %cst_15 = arith.constant dense<0.000000e+00> : vector<8x8xf32>
    %42 = tpu.matmul %39, %40, %cst_15 {dimension_numbers = #tpu.dot_dimension_numbers<[1], [1], [0], [0], [0, 0, 1, 0], [], []>} : vector<8x8xf32>, vector<8x8xf32>, vector<8x8xf32> -> vector<8x8xf32>
    "tpu.trace_stop"() : () -> ()
    %cst_16 = arith.constant 0.353553385 : f32
    %43 = vector.broadcast %cst_16 : f32 to vector<8x8xf32>
    %44 = arith.mulf %42, %43 : vector<8x8xf32>
    %cst_17 = arith.constant dense<0xFF800000> : vector<8xf32>
    %45 = vector.multi_reduction <maximumf>, %44, %cst_17 [1] : vector<8x8xf32> to vector<8xf32>
    %46 = vector.shape_cast %45 : vector<8xf32> to vector<8x1xf32>
    %47 = vector.broadcast %46 : vector<8x1xf32> to vector<8x8xf32>
    %48 = arith.subf %44, %47 : vector<8x8xf32>
    %49 = math.exp %48 : vector<8x8xf32>
    %cst_18 = arith.constant dense<0.000000e+00> : vector<8xf32>
    %50 = vector.multi_reduction <add>, %49, %cst_18 [1] : vector<8x8xf32> to vector<8xf32>
    %51 = vector.shape_cast %50 : vector<8xf32> to vector<8x1xf32>
    %52 = tpu.reciprocal %51 : vector<8x1xf32> -> vector<8x1xf32>
    %53 = vector.broadcast %52 : vector<8x1xf32> to vector<8x8xf32>
    %54 = arith.mulf %49, %53 : vector<8x8xf32>
    %cst_19 = arith.constant dense<0.000000e+00> : vector<8x8xf32>
    %55 = tpu.matmul %54, %41, %cst_19 {dimension_numbers = #tpu.dot_dimension_numbers<[1], [0], [0], [1], [0, 0, 1, 1], [], []>} : vector<8x8xf32>, vector<8x8xf32>, vector<8x8xf32> -> vector<8x8xf32>
    %56 = vector.extract_strided_slice %4 {offsets = [0, 24], sizes = [8, 8], strides = [1, 1]} : vector<8x96xf32> to vector<8x8xf32>
    %57 = vector.extract_strided_slice %4 {offsets = [0, 56], sizes = [8, 8], strides = [1, 1]} : vector<8x96xf32> to vector<8x8xf32>
    %58 = vector.extract_strided_slice %4 {offsets = [0, 88], sizes = [8, 8], strides = [1, 1]} : vector<8x96xf32> to vector<8x8xf32>
    "tpu.trace_start"() <{level = 10 : i32, message = "qe,ke->qk"}> : () -> ()
    %cst_20 = arith.constant dense<0.000000e+00> : vector<8x8xf32>
    %59 = tpu.matmul %56, %57, %cst_20 {dimension_numbers = #tpu.dot_dimension_numbers<[1], [1], [0], [0], [0, 0, 1, 0], [], []>} : vector<8x8xf32>, vector<8x8xf32>, vector<8x8xf32> -> vector<8x8xf32>
    "tpu.trace_stop"() : () -> ()
    %cst_21 = arith.constant 0.353553385 : f32
    %60 = vector.broadcast %cst_21 : f32 to vector<8x8xf32>
    %61 = arith.mulf %59, %60 : vector<8x8xf32>
    %cst_22 = arith.constant dense<0xFF800000> : vector<8xf32>
    %62 = vector.multi_reduction <maximumf>, %61, %cst_22 [1] : vector<8x8xf32> to vector<8xf32>
    %63 = vector.shape_cast %62 : vector<8xf32> to vector<8x1xf32>
    %64 = vector.broadcast %63 : vector<8x1xf32> to vector<8x8xf32>
    %65 = arith.subf %61, %64 : vector<8x8xf32>
    %66 = math.exp %65 : vector<8x8xf32>
    %cst_23 = arith.constant dense<0.000000e+00> : vector<8xf32>
    %67 = vector.multi_reduction <add>, %66, %cst_23 [1] : vector<8x8xf32> to vector<8xf32>
    %68 = vector.shape_cast %67 : vector<8xf32> to vector<8x1xf32>
    %69 = tpu.reciprocal %68 : vector<8x1xf32> -> vector<8x1xf32>
    %70 = vector.broadcast %69 : vector<8x1xf32> to vector<8x8xf32>
    %71 = arith.mulf %66, %70 : vector<8x8xf32>
    %cst_24 = arith.constant dense<0.000000e+00> : vector<8x8xf32>
    %72 = tpu.matmul %71, %58, %cst_24 {dimension_numbers = #tpu.dot_dimension_numbers<[1], [0], [0], [1], [0, 0, 1, 1], [], []>} : vector<8x8xf32>, vector<8x8xf32>, vector<8x8xf32> -> vector<8x8xf32>
    %73 = tpu.concatenate %21, %38, %55, %72 in 1 : vector<8x8xf32>, vector<8x8xf32>, vector<8x8xf32>, vector<8x8xf32> -> vector<8x32xf32>
    %c0_25 = arith.constant 0 : index
    %c0_26 = arith.constant 0 : index
    %c0_27 = arith.constant 0 : index
    %74 = vector.load %arg3[%c0_25, %c0_26, %c0_27] : memref<2x32x32xf32, #tpu.memory_space<vmem>>, vector<1x32x32xf32>
    %75 = vector.shape_cast %74 : vector<1x32x32xf32> to vector<32x32xf32>
    %cst_28 = arith.constant dense<0.000000e+00> : vector<8x32xf32>
    %76 = tpu.matmul %73, %75, %cst_28 {dimension_numbers = #tpu.dot_dimension_numbers<[1], [0], [0], [1], [0, 0, 1, 1], [], []>} : vector<8x32xf32>, vector<32x32xf32>, vector<8x32xf32> -> vector<8x32xf32>
    %77 = arith.addf %1, %76 : vector<8x32xf32>
    %c0_29 = arith.constant 0 : index
    %c0_30 = arith.constant 0 : index
    %c0_31 = arith.constant 0 : index
    %78 = vector.load %arg4[%c0_29, %c0_30, %c0_31] : memref<2x32x64xf32, #tpu.memory_space<vmem>>, vector<1x32x64xf32>
    %79 = vector.shape_cast %78 : vector<1x32x64xf32> to vector<32x64xf32>
    %cst_32 = arith.constant dense<0.000000e+00> : vector<8x64xf32>
    %80 = tpu.matmul %77, %79, %cst_32 {dimension_numbers = #tpu.dot_dimension_numbers<[1], [0], [0], [1], [0, 0, 1, 1], [], []>} : vector<8x32xf32>, vector<32x64xf32>, vector<8x64xf32> -> vector<8x64xf32>
    %c0_33 = arith.constant 0 : index
    %c0_34 = arith.constant 0 : index
    %c0_35 = arith.constant 0 : index
    %81 = vector.load %arg5[%c0_33, %c0_34, %c0_35] : memref<2x1x64xf32, #tpu.memory_space<vmem>>, vector<1x1x64xf32>
    %82 = vector.shape_cast %81 : vector<1x1x64xf32> to vector<1x64xf32>
    %83 = vector.broadcast %82 : vector<1x64xf32> to vector<8x64xf32>
    %84 = arith.addf %80, %83 : vector<8x64xf32>
    %cst_36 = arith.constant 0.000000e+00 : f32
    %85 = vector.broadcast %cst_36 : f32 to vector<8x64xf32>
    %86 = arith.maximumf %84, %85 : vector<8x64xf32>
    %c0_37 = arith.constant 0 : index
    %c0_38 = arith.constant 0 : index
    %c0_39 = arith.constant 0 : index
    %87 = vector.load %arg6[%c0_37, %c0_38, %c0_39] : memref<2x64x32xf32, #tpu.memory_space<vmem>>, vector<1x64x32xf32>
    %88 = vector.shape_cast %87 : vector<1x64x32xf32> to vector<64x32xf32>
    %cst_40 = arith.constant dense<0.000000e+00> : vector<8x32xf32>
    %89 = tpu.matmul %86, %88, %cst_40 {dimension_numbers = #tpu.dot_dimension_numbers<[1], [0], [0], [1], [0, 0, 1, 1], [], []>} : vector<8x64xf32>, vector<64x32xf32>, vector<8x32xf32> -> vector<8x32xf32>
    %c0_41 = arith.constant 0 : index
    %c0_42 = arith.constant 0 : index
    %c0_43 = arith.constant 0 : index
    %90 = vector.load %arg7[%c0_41, %c0_42, %c0_43] : memref<2x1x32xf32, #tpu.memory_space<vmem>>, vector<1x1x32xf32>
    %91 = vector.shape_cast %90 : vector<1x1x32xf32> to vector<1x32xf32>
    %92 = vector.broadcast %91 : vector<1x32xf32> to vector<8x32xf32>
    %93 = arith.addf %89, %92 : vector<8x32xf32>
    %94 = arith.addf %77, %93 : vector<8x32xf32>
    %c1 = arith.constant 1 : index
    %c0_44 = arith.constant 0 : index
    %c0_45 = arith.constant 0 : index
    %95 = vector.load %arg2[%c1, %c0_44, %c0_45] : memref<2x32x96xf32, #tpu.memory_space<vmem>>, vector<1x32x96xf32>
    %96 = vector.shape_cast %95 : vector<1x32x96xf32> to vector<32x96xf32>
    %cst_46 = arith.constant dense<0.000000e+00> : vector<8x96xf32>
    %97 = tpu.matmul %94, %96, %cst_46 {dimension_numbers = #tpu.dot_dimension_numbers<[1], [0], [0], [1], [0, 0, 1, 1], [], []>} : vector<8x32xf32>, vector<32x96xf32>, vector<8x96xf32> -> vector<8x96xf32>
    %98 = vector.extract_strided_slice %97 {offsets = [0, 0], sizes = [8, 8], strides = [1, 1]} : vector<8x96xf32> to vector<8x8xf32>
    %99 = vector.extract_strided_slice %97 {offsets = [0, 32], sizes = [8, 8], strides = [1, 1]} : vector<8x96xf32> to vector<8x8xf32>
    %100 = vector.extract_strided_slice %97 {offsets = [0, 64], sizes = [8, 8], strides = [1, 1]} : vector<8x96xf32> to vector<8x8xf32>
    "tpu.trace_start"() <{level = 10 : i32, message = "qe,ke->qk"}> : () -> ()
    %cst_47 = arith.constant dense<0.000000e+00> : vector<8x8xf32>
    %101 = tpu.matmul %98, %99, %cst_47 {dimension_numbers = #tpu.dot_dimension_numbers<[1], [1], [0], [0], [0, 0, 1, 0], [], []>} : vector<8x8xf32>, vector<8x8xf32>, vector<8x8xf32> -> vector<8x8xf32>
    "tpu.trace_stop"() : () -> ()
    %cst_48 = arith.constant 0.353553385 : f32
    %102 = vector.broadcast %cst_48 : f32 to vector<8x8xf32>
    %103 = arith.mulf %101, %102 : vector<8x8xf32>
    %cst_49 = arith.constant dense<0xFF800000> : vector<8xf32>
    %104 = vector.multi_reduction <maximumf>, %103, %cst_49 [1] : vector<8x8xf32> to vector<8xf32>
    %105 = vector.shape_cast %104 : vector<8xf32> to vector<8x1xf32>
    %106 = vector.broadcast %105 : vector<8x1xf32> to vector<8x8xf32>
    %107 = arith.subf %103, %106 : vector<8x8xf32>
    %108 = math.exp %107 : vector<8x8xf32>
    %cst_50 = arith.constant dense<0.000000e+00> : vector<8xf32>
    %109 = vector.multi_reduction <add>, %108, %cst_50 [1] : vector<8x8xf32> to vector<8xf32>
    %110 = vector.shape_cast %109 : vector<8xf32> to vector<8x1xf32>
    %111 = tpu.reciprocal %110 : vector<8x1xf32> -> vector<8x1xf32>
    %112 = vector.broadcast %111 : vector<8x1xf32> to vector<8x8xf32>
    %113 = arith.mulf %108, %112 : vector<8x8xf32>
    %cst_51 = arith.constant dense<0.000000e+00> : vector<8x8xf32>
    %114 = tpu.matmul %113, %100, %cst_51 {dimension_numbers = #tpu.dot_dimension_numbers<[1], [0], [0], [1], [0, 0, 1, 1], [], []>} : vector<8x8xf32>, vector<8x8xf32>, vector<8x8xf32> -> vector<8x8xf32>
    %115 = vector.extract_strided_slice %97 {offsets = [0, 8], sizes = [8, 8], strides = [1, 1]} : vector<8x96xf32> to vector<8x8xf32>
    %116 = vector.extract_strided_slice %97 {offsets = [0, 40], sizes = [8, 8], strides = [1, 1]} : vector<8x96xf32> to vector<8x8xf32>
    %117 = vector.extract_strided_slice %97 {offsets = [0, 72], sizes = [8, 8], strides = [1, 1]} : vector<8x96xf32> to vector<8x8xf32>
    "tpu.trace_start"() <{level = 10 : i32, message = "qe,ke->qk"}> : () -> ()
    %cst_52 = arith.constant dense<0.000000e+00> : vector<8x8xf32>
    %118 = tpu.matmul %115, %116, %cst_52 {dimension_numbers = #tpu.dot_dimension_numbers<[1], [1], [0], [0], [0, 0, 1, 0], [], []>} : vector<8x8xf32>, vector<8x8xf32>, vector<8x8xf32> -> vector<8x8xf32>
    "tpu.trace_stop"() : () -> ()
    %cst_53 = arith.constant 0.353553385 : f32
    %119 = vector.broadcast %cst_53 : f32 to vector<8x8xf32>
    %120 = arith.mulf %118, %119 : vector<8x8xf32>
    %cst_54 = arith.constant dense<0xFF800000> : vector<8xf32>
    %121 = vector.multi_reduction <maximumf>, %120, %cst_54 [1] : vector<8x8xf32> to vector<8xf32>
    %122 = vector.shape_cast %121 : vector<8xf32> to vector<8x1xf32>
    %123 = vector.broadcast %122 : vector<8x1xf32> to vector<8x8xf32>
    %124 = arith.subf %120, %123 : vector<8x8xf32>
    %125 = math.exp %124 : vector<8x8xf32>
    %cst_55 = arith.constant dense<0.000000e+00> : vector<8xf32>
    %126 = vector.multi_reduction <add>, %125, %cst_55 [1] : vector<8x8xf32> to vector<8xf32>
    %127 = vector.shape_cast %126 : vector<8xf32> to vector<8x1xf32>
    %128 = tpu.reciprocal %127 : vector<8x1xf32> -> vector<8x1xf32>
    %129 = vector.broadcast %128 : vector<8x1xf32> to vector<8x8xf32>
    %130 = arith.mulf %125, %129 : vector<8x8xf32>
    %cst_56 = arith.constant dense<0.000000e+00> : vector<8x8xf32>
    %131 = tpu.matmul %130, %117, %cst_56 {dimension_numbers = #tpu.dot_dimension_numbers<[1], [0], [0], [1], [0, 0, 1, 1], [], []>} : vector<8x8xf32>, vector<8x8xf32>, vector<8x8xf32> -> vector<8x8xf32>
    %132 = vector.extract_strided_slice %97 {offsets = [0, 16], sizes = [8, 8], strides = [1, 1]} : vector<8x96xf32> to vector<8x8xf32>
    %133 = vector.extract_strided_slice %97 {offsets = [0, 48], sizes = [8, 8], strides = [1, 1]} : vector<8x96xf32> to vector<8x8xf32>
    %134 = vector.extract_strided_slice %97 {offsets = [0, 80], sizes = [8, 8], strides = [1, 1]} : vector<8x96xf32> to vector<8x8xf32>
    "tpu.trace_start"() <{level = 10 : i32, message = "qe,ke->qk"}> : () -> ()
    %cst_57 = arith.constant dense<0.000000e+00> : vector<8x8xf32>
    %135 = tpu.matmul %132, %133, %cst_57 {dimension_numbers = #tpu.dot_dimension_numbers<[1], [1], [0], [0], [0, 0, 1, 0], [], []>} : vector<8x8xf32>, vector<8x8xf32>, vector<8x8xf32> -> vector<8x8xf32>
    "tpu.trace_stop"() : () -> ()
    %cst_58 = arith.constant 0.353553385 : f32
    %136 = vector.broadcast %cst_58 : f32 to vector<8x8xf32>
    %137 = arith.mulf %135, %136 : vector<8x8xf32>
    %cst_59 = arith.constant dense<0xFF800000> : vector<8xf32>
    %138 = vector.multi_reduction <maximumf>, %137, %cst_59 [1] : vector<8x8xf32> to vector<8xf32>
    %139 = vector.shape_cast %138 : vector<8xf32> to vector<8x1xf32>
    %140 = vector.broadcast %139 : vector<8x1xf32> to vector<8x8xf32>
    %141 = arith.subf %137, %140 : vector<8x8xf32>
    %142 = math.exp %141 : vector<8x8xf32>
    %cst_60 = arith.constant dense<0.000000e+00> : vector<8xf32>
    %143 = vector.multi_reduction <add>, %142, %cst_60 [1] : vector<8x8xf32> to vector<8xf32>
    %144 = vector.shape_cast %143 : vector<8xf32> to vector<8x1xf32>
    %145 = tpu.reciprocal %144 : vector<8x1xf32> -> vector<8x1xf32>
    %146 = vector.broadcast %145 : vector<8x1xf32> to vector<8x8xf32>
    %147 = arith.mulf %142, %146 : vector<8x8xf32>
    %cst_61 = arith.constant dense<0.000000e+00> : vector<8x8xf32>
    %148 = tpu.matmul %147, %134, %cst_61 {dimension_numbers = #tpu.dot_dimension_numbers<[1], [0], [0], [1], [0, 0, 1, 1], [], []>} : vector<8x8xf32>, vector<8x8xf32>, vector<8x8xf32> -> vector<8x8xf32>
    %149 = vector.extract_strided_slice %97 {offsets = [0, 24], sizes = [8, 8], strides = [1, 1]} : vector<8x96xf32> to vector<8x8xf32>
    %150 = vector.extract_strided_slice %97 {offsets = [0, 56], sizes = [8, 8], strides = [1, 1]} : vector<8x96xf32> to vector<8x8xf32>
    %151 = vector.extract_strided_slice %97 {offsets = [0, 88], sizes = [8, 8], strides = [1, 1]} : vector<8x96xf32> to vector<8x8xf32>
    "tpu.trace_start"() <{level = 10 : i32, message = "qe,ke->qk"}> : () -> ()
    %cst_62 = arith.constant dense<0.000000e+00> : vector<8x8xf32>
    %152 = tpu.matmul %149, %150, %cst_62 {dimension_numbers = #tpu.dot_dimension_numbers<[1], [1], [0], [0], [0, 0, 1, 0], [], []>} : vector<8x8xf32>, vector<8x8xf32>, vector<8x8xf32> -> vector<8x8xf32>
    "tpu.trace_stop"() : () -> ()
    %cst_63 = arith.constant 0.353553385 : f32
    %153 = vector.broadcast %cst_63 : f32 to vector<8x8xf32>
    %154 = arith.mulf %152, %153 : vector<8x8xf32>
    %cst_64 = arith.constant dense<0xFF800000> : vector<8xf32>
    %155 = vector.multi_reduction <maximumf>, %154, %cst_64 [1] : vector<8x8xf32> to vector<8xf32>
    %156 = vector.shape_cast %155 : vector<8xf32> to vector<8x1xf32>
    %157 = vector.broadcast %156 : vector<8x1xf32> to vector<8x8xf32>
    %158 = arith.subf %154, %157 : vector<8x8xf32>
    %159 = math.exp %158 : vector<8x8xf32>
    %cst_65 = arith.constant dense<0.000000e+00> : vector<8xf32>
    %160 = vector.multi_reduction <add>, %159, %cst_65 [1] : vector<8x8xf32> to vector<8xf32>
    %161 = vector.shape_cast %160 : vector<8xf32> to vector<8x1xf32>
    %162 = tpu.reciprocal %161 : vector<8x1xf32> -> vector<8x1xf32>
    %163 = vector.broadcast %162 : vector<8x1xf32> to vector<8x8xf32>
    %164 = arith.mulf %159, %163 : vector<8x8xf32>
    %cst_66 = arith.constant dense<0.000000e+00> : vector<8x8xf32>
    %165 = tpu.matmul %164, %151, %cst_66 {dimension_numbers = #tpu.dot_dimension_numbers<[1], [0], [0], [1], [0, 0, 1, 1], [], []>} : vector<8x8xf32>, vector<8x8xf32>, vector<8x8xf32> -> vector<8x8xf32>
    %166 = tpu.concatenate %114, %131, %148, %165 in 1 : vector<8x8xf32>, vector<8x8xf32>, vector<8x8xf32>, vector<8x8xf32> -> vector<8x32xf32>
    %c1_67 = arith.constant 1 : index
    %c0_68 = arith.constant 0 : index
    %c0_69 = arith.constant 0 : index
    %167 = vector.load %arg3[%c1_67, %c0_68, %c0_69] : memref<2x32x32xf32, #tpu.memory_space<vmem>>, vector<1x32x32xf32>
    %168 = vector.shape_cast %167 : vector<1x32x32xf32> to vector<32x32xf32>
    %cst_70 = arith.constant dense<0.000000e+00> : vector<8x32xf32>
    %169 = tpu.matmul %166, %168, %cst_70 {dimension_numbers = #tpu.dot_dimension_numbers<[1], [0], [0], [1], [0, 0, 1, 1], [], []>} : vector<8x32xf32>, vector<32x32xf32>, vector<8x32xf32> -> vector<8x32xf32>
    %170 = arith.addf %94, %169 : vector<8x32xf32>
    %c1_71 = arith.constant 1 : index
    %c0_72 = arith.constant 0 : index
    %c0_73 = arith.constant 0 : index
    %171 = vector.load %arg4[%c1_71, %c0_72, %c0_73] : memref<2x32x64xf32, #tpu.memory_space<vmem>>, vector<1x32x64xf32>
    %172 = vector.shape_cast %171 : vector<1x32x64xf32> to vector<32x64xf32>
    %cst_74 = arith.constant dense<0.000000e+00> : vector<8x64xf32>
    %173 = tpu.matmul %170, %172, %cst_74 {dimension_numbers = #tpu.dot_dimension_numbers<[1], [0], [0], [1], [0, 0, 1, 1], [], []>} : vector<8x32xf32>, vector<32x64xf32>, vector<8x64xf32> -> vector<8x64xf32>
    %c1_75 = arith.constant 1 : index
    %c0_76 = arith.constant 0 : index
    %c0_77 = arith.constant 0 : index
    %174 = vector.load %arg5[%c1_75, %c0_76, %c0_77] : memref<2x1x64xf32, #tpu.memory_space<vmem>>, vector<1x1x64xf32>
    %175 = vector.shape_cast %174 : vector<1x1x64xf32> to vector<1x64xf32>
    %176 = vector.broadcast %175 : vector<1x64xf32> to vector<8x64xf32>
    %177 = arith.addf %173, %176 : vector<8x64xf32>
    %cst_78 = arith.constant 0.000000e+00 : f32
    %178 = vector.broadcast %cst_78 : f32 to vector<8x64xf32>
    %179 = arith.maximumf %177, %178 : vector<8x64xf32>
    %c1_79 = arith.constant 1 : index
    %c0_80 = arith.constant 0 : index
    %c0_81 = arith.constant 0 : index
    %180 = vector.load %arg6[%c1_79, %c0_80, %c0_81] : memref<2x64x32xf32, #tpu.memory_space<vmem>>, vector<1x64x32xf32>
    %181 = vector.shape_cast %180 : vector<1x64x32xf32> to vector<64x32xf32>
    %cst_82 = arith.constant dense<0.000000e+00> : vector<8x32xf32>
    %182 = tpu.matmul %179, %181, %cst_82 {dimension_numbers = #tpu.dot_dimension_numbers<[1], [0], [0], [1], [0, 0, 1, 1], [], []>} : vector<8x64xf32>, vector<64x32xf32>, vector<8x32xf32> -> vector<8x32xf32>
    %c1_83 = arith.constant 1 : index
    %c0_84 = arith.constant 0 : index
    %c0_85 = arith.constant 0 : index
    %183 = vector.load %arg7[%c1_83, %c0_84, %c0_85] : memref<2x1x32xf32, #tpu.memory_space<vmem>>, vector<1x1x32xf32>
    %184 = vector.shape_cast %183 : vector<1x1x32xf32> to vector<1x32xf32>
    %185 = vector.broadcast %184 : vector<1x32xf32> to vector<8x32xf32>
    %186 = arith.addf %182, %185 : vector<8x32xf32>
    %187 = arith.addf %170, %186 : vector<8x32xf32>
    %c0_86 = arith.constant 0 : index
    %c0_87 = arith.constant 0 : index
    %188 = vector.load %arg8[%c0_86, %c0_87] : memref<32x128xf32, #tpu.memory_space<vmem>>, vector<32x128xf32>
    %cst_88 = arith.constant dense<0.000000e+00> : vector<8x128xf32>
    %189 = tpu.matmul %187, %188, %cst_88 {dimension_numbers = #tpu.dot_dimension_numbers<[1], [0], [0], [1], [0, 0, 1, 1], [], []>} : vector<8x32xf32>, vector<32x128xf32>, vector<8x128xf32> -> vector<8x128xf32>
    %c0_89 = arith.constant 0 : index
    %c0_90 = arith.constant 0 : index
    %c0_91 = arith.constant 0 : index
    %190 = vector.load %arg9[%c0_89, %c0_90, %c0_91] : memref<1x8x128xf32, #tpu.memory_space<vmem>>, vector<1x8x128xf32>
    %191 = vector.shape_cast %190 : vector<1x8x128xf32> to vector<8x128xf32>
    %192 = vector.shape_cast %189 : vector<8x128xf32> to vector<1x8x128xf32>
    tpu.vector_store %arg9[%c0_89, %c0_90, %c0_91], %192 {strides = array<i32>} : memref<1x8x128xf32, #tpu.memory_space<vmem>>, vector<1x8x128xf32>,
    return
  }
  func.func @transform_0(%arg0: i32) -> (i32, i32, i32) {
    %c0_i32 = arith.constant 0 : i32
    %c0_i32_0 = arith.constant 0 : i32
    %c0_i32_1 = arith.constant 0 : i32
    return %arg0, %c0_i32, %c0_i32_0 : i32, i32, i32
  }
  func.func @transform_1(%arg0: i32) -> (i32, i32, i32) {
    %c0_i32 = arith.constant 0 : i32
    %c0_i32_0 = arith.constant 0 : i32
    %c0_i32_1 = arith.constant 0 : i32
    %c0_i32_2 = arith.constant 0 : i32
    return %c0_i32, %c0_i32_0, %c0_i32_1 : i32, i32, i32
  }
  func.func @transform_2(%arg0: i32) -> (i32, i32, i32) {
    %c0_i32 = arith.constant 0 : i32
    %c0_i32_0 = arith.constant 0 : i32
    %c0_i32_1 = arith.constant 0 : i32
    %c0_i32_2 = arith.constant 0 : i32
    return %c0_i32, %c0_i32_0, %c0_i32_1 : i32, i32, i32
  }
  func.func @transform_3(%arg0: i32) -> (i32, i32, i32) {
    %c0_i32 = arith.constant 0 : i32
    %c0_i32_0 = arith.constant 0 : i32
    %c0_i32_1 = arith.constant 0 : i32
    %c0_i32_2 = arith.constant 0 : i32
    return %c0_i32, %c0_i32_0, %c0_i32_1 : i32, i32, i32
  }
  func.func @transform_4(%arg0: i32) -> (i32, i32, i32) {
    %c0_i32 = arith.constant 0 : i32
    %c0_i32_0 = arith.constant 0 : i32
    %c0_i32_1 = arith.constant 0 : i32
    %c0_i32_2 = arith.constant 0 : i32
    return %c0_i32, %c0_i32_0, %c0_i32_1 : i32, i32, i32
  }
  func.func @transform_5(%arg0: i32) -> (i32, i32, i32) {
    %c0_i32 = arith.constant 0 : i32
    %c0_i32_0 = arith.constant 0 : i32
    %c0_i32_1 = arith.constant 0 : i32
    %c0_i32_2 = arith.constant 0 : i32
    return %c0_i32, %c0_i32_0, %c0_i32_1 : i32, i32, i32
  }
  func.func @transform_6(%arg0: i32) -> (i32, i32, i32) {
    %c0_i32 = arith.constant 0 : i32
    %c0_i32_0 = arith.constant 0 : i32
    %c0_i32_1 = arith.constant 0 : i32
    %c0_i32_2 = arith.constant 0 : i32
    return %c0_i32, %c0_i32_0, %c0_i32_1 : i32, i32, i32
  }
  func.func @transform_7(%arg0: i32) -> (i32, i32) {
    %c0_i32 = arith.constant 0 : i32
    %c0_i32_0 = arith.constant 0 : i32
    %c0_i32_1 = arith.constant 0 : i32
    return %c0_i32, %c0_i32_0 : i32, i32
  }
  func.func @transform_8(%arg0: i32) -> (i32, i32, i32) {
    %c0_i32 = arith.constant 0 : i32
    %c0_i32_0 = arith.constant 0 : i32
    %c0_i32_1 = arith.constant 0 : i32
    return %arg0, %c0_i32, %c0_i32_0 : i32, i32, i32
  }
}

</mosaic_0001>

<llo_original>
// kernel: tpu_custom_call.1
$region0: #{tpu_custom_call.1}
  #allocation0 [shape = 'u32[]', space=smem, size = 0x4, offset = 0x4, fixed_abs, tag = 'smem constant byte address 0x4 - core index']
  #allocation1 [shape = 'u32[144,128]{1,0:T(1,128)}', space=vmem, size = 0x12000, scoped, tag = 'internal scratch']
  %s0 = inlined_call_operand.hbm [shape: f32[2,8,32], index: 0, kind: input, shape index: {}]
  %s1 = inlined_call_operand.vmem [shape: f32[2,32,96], index: 1, kind: input, shape index: {}]
  %s2 = inlined_call_operand.vmem [shape: f32[2,32,32], index: 2, kind: input, shape index: {}]
  %s3 = inlined_call_operand.vmem [shape: f32[2,32,64], index: 3, kind: input, shape index: {}]
  %s4 = inlined_call_operand.vmem [shape: f32[2,1,64], index: 4, kind: input, shape index: {}]
  %s5 = inlined_call_operand.vmem [shape: f32[2,64,32], index: 5, kind: input, shape index: {}]
  %s6 = inlined_call_operand.vmem [shape: f32[2,1,32], index: 6, kind: input, shape index: {}]
  %s7 = inlined_call_operand.hbm [shape: f32[32,128], index: 7, kind: input, shape index: {}]
  %s8 = inlined_call_operand.hbm [shape: f32[2,8,128], index: 8, kind: output, shape index: {}]
  %s9 = sld [smem:[#allocation0]]
  $region73: #{tpu_custom_call.1} parent=0
    _
  %s11 = ssub.s32 1, %s9
  %s12 = scalar_select 0, %s11, %s9
  $region1: #{tpu_custom_call.1} parent=0
    #allocation2 [shape = 'u8[8192]{0}', space=vmem, size = 0x2000, scoped, tag = 'input window, operand 0']
    #allocation3 [shape = 's32[2]{0}', space=sflag, size = 0x8, scoped, tag = 'scoped memory for tpu_custom_call.1']
    #allocation4 [shape = 's32[2]{0}', space=sflag, size = 0x8, scoped, tag = 'scoped memory for tpu_custom_call.1']
    #allocation5 [shape = 'u8[16384]{0}', space=vmem, size = 0x4000, scoped, tag = 'input window, operand 7, single buffered']
    #allocation6 [shape = 's32[1]{0}', space=sflag, size = 0x4, scoped, tag = 'scoped memory for tpu_custom_call.1']
    #allocation7 [shape = 'u8[8192]{0}', space=vmem, size = 0x2000, scoped, tag = 'output window, operand 0']
    %13 = vsyncpa [#allocation3], 0
    %s14 = scalar_lea.sflag [#allocation3], 1
    %15 = vsyncpa %s14, 0
    %16 = vsyncpa [#allocation6], 0
    %17 = vsyncpa [#allocation4], 0
    %s18 = scalar_lea.sflag [#allocation4], 1
    %19 = vsyncpa %s18, 0
    loop: start=0, step=1, limit=4
    $region2: #{tpu_custom_call.1} parent=1 // loop_pre_header
      _
    $region3: #{tpu_custom_call.1} parent=1 // loop_header
      %s21 = sphi 0, %s25
      %p22 = scmp.ge.s32.totalorder %s21, 4
      %s31 = sphi 0, %s33
      %s34 = sphi 0, %s31
      %s35 = sphi 0, %s34
      %s51 = sphi 0, %s35
      %s55 = sphi 0, %s55
      %s57 = sphi 0, %s55
      %s58 = sphi 0, %s57
      %s72 = sphi 0, %s58
      %s76 = sphi 0, %s76
      %s78 = sphi 0, %s76
      %s79 = sphi 0, %s78
      %s93 = sphi 0, %s79
      %s97 = sphi 0, %s97
      %s99 = sphi 0, %s97
      %s100 = sphi 0, %s99
      %s114 = sphi 0, %s100
      %s118 = sphi 0, %s118
      %s120 = sphi 0, %s118
      %s121 = sphi 0, %s120
      %s135 = sphi 0, %s121
      %s139 = sphi 0, %s139
      %s141 = sphi 0, %s139
      %s142 = sphi 0, %s141
      %s156 = sphi 0, %s142
      %s160 = sphi 0, %s160
      %s162 = sphi 0, %s160
      %s163 = sphi 0, %s162
      %s177 = sphi 0, %s163
      %s181 = sphi 0, %s181
      %s183 = sphi 0, %s181
      %s184 = sphi 0, %s183
      %s198 = sphi 0, %s184
      %s204 = sphi 0, %s206
      %s207 = sphi 0, %s204
      %s208 = sphi 0, %s207
      %s224 = sphi 0, %s208
    $region4: #{tpu_custom_call.1} parent=1 // loop_header_branch
      %24 = sbr.rel (%p22) target = $region8
    $region5: #{tpu_custom_call.1} parent=1 // loop_body
      %s26 = ssub.s32 %s21, 1
      %s27 = ssub.s32 %s21, 2
      %s28 = sadd.s32 %s21, 1
      %s29 = ssub.s32 %s21, %s28
      %p30 = scmp.eq.s32.totalorder %s29, 0
      %s32 = sadd.s32 %s31, 1
      %s33 = scalar_select %p30, %s31, %s32
      %p36 = pneg %p30
      %p37 = scmp.eq.s32.totalorder %s21, 1
      %p38 = por %p36, %p37
      %p39 = scmp.ne.s32.totalorder %s31, %s34
      %p40 = scmp.eq.s32.totalorder %s21, 0
      %p41 = por %p39, %p40
      %p42 = scmp.ne.s32.totalorder %s31, %s34
      %p43 = scmp.eq.s32.totalorder %s26, 1
      %p44 = por %p42, %p43
      %p45 = scmp.ne.s32.totalorder %s34, %s35
      %p46 = scmp.eq.s32.totalorder %s26, 0
      %p47 = por %p45, %p46
      %p48 = scmp.ne.s32.totalorder %s34, %s35
      %p49 = scmp.eq.s32.totalorder %s27, 1
      %p50 = por %p48, %p49
      %p52 = scmp.ne.s32.totalorder %s35, %s51
      %p53 = scmp.eq.s32.totalorder %s27, 0
      %p54 = por %p52, %p53
      %s56 = sadd.s32 %s55, 1
      %p59 = scmp.eq.s32.totalorder %s21, 1
      %p60 = scmp.ne.s32.totalorder %s55, %s57
      %p61 = scmp.eq.s32.totalorder %s21, 0
      %p62 = por %p60, %p61
      %p63 = scmp.ne.s32.totalorder %s55, %s57
      %p64 = scmp.eq.s32.totalorder %s26, 1
      %p65 = por %p63, %p64
      %p66 = scmp.ne.s32.totalorder %s57, %s58
      %p67 = scmp.eq.s32.totalorder %s26, 0
      %p68 = por %p66, %p67
      %p69 = scmp.ne.s32.totalorder %s57, %s58
      %p70 = scmp.eq.s32.totalorder %s27, 1
      %p71 = por %p69, %p70
      %p73 = scmp.ne.s32.totalorder %s58, %s72
      %p74 = scmp.eq.s32.totalorder %s27, 0
      %p75 = por %p73, %p74
      %s77 = sadd.s32 %s76, 1
      %p80 = scmp.eq.s32.totalorder %s21, 1
      %p81 = scmp.ne.s32.totalorder %s76, %s78
      %p82 = scmp.eq.s32.totalorder %s21, 0
      %p83 = por %p81, %p82
      %p84 = scmp.ne.s32.totalorder %s76, %s78
      %p85 = scmp.eq.s32.totalorder %s26, 1
      %p86 = por %p84, %p85
      %p87 = scmp.ne.s32.totalorder %s78, %s79
      %p88 = scmp.eq.s32.totalorder %s26, 0
      %p89 = por %p87, %p88
      %p90 = scmp.ne.s32.totalorder %s78, %s79
      %p91 = scmp.eq.s32.totalorder %s27, 1
      %p92 = por %p90, %p91
      %p94 = scmp.ne.s32.totalorder %s79, %s93
      %p95 = scmp.eq.s32.totalorder %s27, 0
      %p96 = por %p94, %p95
      %s98 = sadd.s32 %s97, 1
      %p101 = scmp.eq.s32.totalorder %s21, 1
      %p102 = scmp.ne.s32.totalorder %s97, %s99
      %p103 = scmp.eq.s32.totalorder %s21, 0
      %p104 = por %p102, %p103
      %p105 = scmp.ne.s32.totalorder %s97, %s99
      %p106 = scmp.eq.s32.totalorder %s26, 1
      %p107 = por %p105, %p106
      %p108 = scmp.ne.s32.totalorder %s99, %s100
      %p109 = scmp.eq.s32.totalorder %s26, 0
      %p110 = por %p108, %p109
      %p111 = scmp.ne.s32.totalorder %s99, %s100
      %p112 = scmp.eq.s32.totalorder %s27, 1
      %p113 = por %p111, %p112
      %p115 = scmp.ne.s32.totalorder %s100, %s114
      %p116 = scmp.eq.s32.totalorder %s27, 0
      %p117 = por %p115, %p116
      %s119 = sadd.s32 %s118, 1
      %p122 = scmp.eq.s32.totalorder %s21, 1
      %p123 = scmp.ne.s32.totalorder %s118, %s120
      %p124 = scmp.eq.s32.totalorder %s21, 0
      %p125 = por %p123, %p124
      %p126 = scmp.ne.s32.totalorder %s118, %s120
      %p127 = scmp.eq.s32.totalorder %s26, 1
      %p128 = por %p126, %p127
      %p129 = scmp.ne.s32.totalorder %s120, %s121
      %p130 = scmp.eq.s32.totalorder %s26, 0
      %p131 = por %p129, %p130
      %p132 = scmp.ne.s32.totalorder %s120, %s121
      %p133 = scmp.eq.s32.totalorder %s27, 1
      %p134 = por %p132, %p133
      %p136 = scmp.ne.s32.totalorder %s121, %s135
      %p137 = scmp.eq.s32.totalorder %s27, 0
      %p138 = por %p136, %p137
      %s140 = sadd.s32 %s139, 1
      %p143 = scmp.eq.s32.totalorder %s21, 1
      %p144 = scmp.ne.s32.totalorder %s139, %s141
      %p145 = scmp.eq.s32.totalorder %s21, 0
      %p146 = por %p144, %p145
      %p147 = scmp.ne.s32.totalorder %s139, %s141
      %p148 = scmp.eq.s32.totalorder %s26, 1
      %p149 = por %p147, %p148
      %p150 = scmp.ne.s32.totalorder %s141, %s142
      %p151 = scmp.eq.s32.totalorder %s26, 0
      %p152 = por %p150, %p151
      %p153 = scmp.ne.s32.totalorder %s141, %s142
      %p154 = scmp.eq.s32.totalorder %s27, 1
      %p155 = por %p153, %p154
      %p157 = scmp.ne.s32.totalorder %s142, %s156
      %p158 = scmp.eq.s32.totalorder %s27, 0
      %p159 = por %p157, %p158
      %s161 = sadd.s32 %s160, 1
      %p164 = scmp.eq.s32.totalorder %s21, 1
      %p165 = scmp.ne.s32.totalorder %s160, %s162
      %p166 = scmp.eq.s32.totalorder %s21, 0
      %p167 = por %p165, %p166
      %p168 = scmp.ne.s32.totalorder %s160, %s162
      %p169 = scmp.eq.s32.totalorder %s26, 1
      %p170 = por %p168, %p169
      %p171 = scmp.ne.s32.totalorder %s162, %s163
      %p172 = scmp.eq.s32.totalorder %s26, 0
      %p173 = por %p171, %p172
      %p174 = scmp.ne.s32.totalorder %s162, %s163
      %p175 = scmp.eq.s32.totalorder %s27, 1
      %p176 = por %p174, %p175
      %p178 = scmp.ne.s32.totalorder %s163, %s177
      %p179 = scmp.eq.s32.totalorder %s27, 0
      %p180 = por %p178, %p179
      %s182 = sadd.s32 %s181, 1
      %p185 = scmp.eq.s32.totalorder %s21, 1
      %p186 = scmp.ne.s32.totalorder %s181, %s183
      %p187 = scmp.eq.s32.totalorder %s21, 0
      %p188 = por %p186, %p187
      %p189 = scmp.ne.s32.totalorder %s181, %s183
      %p190 = scmp.eq.s32.totalorder %s26, 1
      %p191 = por %p189, %p190
      %p192 = scmp.ne.s32.totalorder %s183, %s184
      %p193 = scmp.eq.s32.totalorder %s26, 0
      %p194 = por %p192, %p193
      %p195 = scmp.ne.s32.totalorder %s183, %s184
      %p196 = scmp.eq.s32.totalorder %s27, 1
      %p197 = por %p195, %p196
      %p199 = scmp.ne.s32.totalorder %s184, %s198
      %p200 = scmp.eq.s32.totalorder %s27, 0
      %p201 = por %p199, %p200
      %s202 = ssub.s32 %s21, %s28
      %p203 = scmp.eq.s32.totalorder %s202, 0
      %s205 = sadd.s32 %s204, 1
      %s206 = scalar_select %p203, %s204, %s205
      %p209 = pneg %p203
      %p210 = scmp.eq.s32.totalorder %s21, 1
      %p211 = por %p209, %p210
      %p212 = scmp.ne.s32.totalorder %s204, %s207
      %p213 = scmp.eq.s32.totalorder %s21, 0
      %p214 = por %p212, %p213
      %p215 = scmp.ne.s32.totalorder %s204, %s207
      %p216 = scmp.eq.s32.totalorder %s26, 1
      %p217 = por %p215, %p216
      %p218 = scmp.ne.s32.totalorder %s207, %s208
      %p219 = scmp.eq.s32.totalorder %s26, 0
      %p220 = por %p218, %p219
      %p221 = scmp.ne.s32.totalorder %s207, %s208
      %p222 = scmp.eq.s32.totalorder %s27, 1
      %p223 = por %p221, %p222
      %p225 = scmp.ne.s32.totalorder %s208, %s224
      %p226 = scmp.eq.s32.totalorder %s27, 0
      %p227 = por %p225, %p226
      %p228 = scmp.le.s32.totalorder 1, %s21
      %p229 = scmp.lt.s32.totalorder %s21, 3
      %p230 = pnand %p228, %p229
      %p231 = pneg %p230
      // Predicated region
      $region9: #{tpu_custom_call.1} parent=5 // pred_check
        _
      $region10: #{tpu_custom_call.1} parent=5 // pred_check_branch
        %233 = sbr.rel (%p230) target = $region12
      $region11: #{tpu_custom_call.1} parent=5 // pred_region
        %s234 = ssub.s32 %s21, 1
        // Predicated region
        $region13: #{tpu_custom_call.1} parent=11 // pred_check
          %p235 = pneg %p68
        $region14: #{tpu_custom_call.1} parent=11 // pred_check_branch
          %237 = sbr.rel (%p235) target = $region16
        $region15: #{tpu_custom_call.1} parent=11 // pred_region
          _
        $region16: #{tpu_custom_call.1} parent=11 // pred_fallthru
          _
        // Predicated region
        $region17: #{tpu_custom_call.1} parent=11 // pred_check
          %p238 = pneg %p89
        $region18: #{tpu_custom_call.1} parent=11 // pred_check_branch
          %240 = sbr.rel (%p238) target = $region20
        $region19: #{tpu_custom_call.1} parent=11 // pred_region
          _
        $region20: #{tpu_custom_call.1} parent=11 // pred_fallthru
          _
        // Predicated region
        $region21: #{tpu_custom_call.1} parent=11 // pred_check
          %p241 = pneg %p110
        $region22: #{tpu_custom_call.1} parent=11 // pred_check_branch
          %243 = sbr.rel (%p241) target = $region24
        $region23: #{tpu_custom_call.1} parent=11 // pred_region
          _
        $region24: #{tpu_custom_call.1} parent=11 // pred_fallthru
          _
        // Predicated region
        $region25: #{tpu_custom_call.1} parent=11 // pred_check
          %p244 = pneg %p131
        $region26: #{tpu_custom_call.1} parent=11 // pred_check_branch
          %246 = sbr.rel (%p244) target = $region28
        $region27: #{tpu_custom_call.1} parent=11 // pred_region
          _
        $region28: #{tpu_custom_call.1} parent=11 // pred_fallthru
          _
        // Predicated region
        $region29: #{tpu_custom_call.1} parent=11 // pred_check
          %p247 = pneg %p152
        $region30: #{tpu_custom_call.1} parent=11 // pred_check_branch
          %249 = sbr.rel (%p247) target = $region32
        $region31: #{tpu_custom_call.1} parent=11 // pred_region
          _
        $region32: #{tpu_custom_call.1} parent=11 // pred_fallthru
          _
        // Predicated region
        $region33: #{tpu_custom_call.1} parent=11 // pred_check
          %p250 = pneg %p173
        $region34: #{tpu_custom_call.1} parent=11 // pred_check_branch
          %252 = sbr.rel (%p250) target = $region36
        $region35: #{tpu_custom_call.1} parent=11 // pred_region
          _
        $region36: #{tpu_custom_call.1} parent=11 // pred_fallthru
          _
        // Predicated region
        $region37: #{tpu_custom_call.1} parent=11 // pred_check
          %p253 = pneg %p194
        $region38: #{tpu_custom_call.1} parent=11 // pred_check_branch
          %255 = sbr.rel (%p253) target = $region40
        $region39: #{tpu_custom_call.1} parent=11 // pred_region
          %s257 = ssub.s32 512, 512
          %258 = vsyncadd [#allocation6], %s257
          %s259 = sshll.u32 [#allocation5], 4
          %s260 = int_to_ptr.vmem [resolvable:$true] %s259
          %265 = dma.hbm_to_vmem [thread:$0]  %s7, 512, %s260, [#allocation6], 128, 128, 8
        $region40: #{tpu_custom_call.1} parent=11 // pred_fallthru
          _
      $region12: #{tpu_custom_call.1} parent=5 // pred_fallthru
        _
      %p266 = scmp.lt.s32.totalorder %s21, 2
      // Predicated region
      $region41: #{tpu_custom_call.1} parent=5 // pred_check
        %p267 = pneg %p266
      $region42: #{tpu_custom_call.1} parent=5 // pred_check_branch
        %269 = sbr.rel (%p267) target = $region44
      $region43: #{tpu_custom_call.1} parent=5 // pred_region
        // Predicated region
        $region45: #{tpu_custom_call.1} parent=43 // pred_check
          %p270 = pneg %p41
        $region46: #{tpu_custom_call.1} parent=43 // pred_check_branch
          %272 = sbr.rel (%p270) target = $region48
        $region47: #{tpu_custom_call.1} parent=43 // pred_region
          %s273 = sand.u32 %s31, 1
          %s274 = scalar_lea.sflag [#allocation3], %s273
          %s275 = sand.u32 %s31, 1
          %s276 = smul.addr %s275, 8
          %s277 = scalar_lea.vmem [#allocation2], %s276
          %s279 = ssub.s32 128, 128
          %280 = vsyncadd %s274, %s279
          %s281 = smul.addr %s21, 128
          %s282 = scalar_lea.hbm %s0, %s281
          %s284 = sshll.u32 %s277, 4
          %s285 = int_to_ptr.vmem [resolvable:$true] %s284
          %287 = dma.hbm_to_vmem [thread:$0]  %s282, 128, %s285, %s274
        $region48: #{tpu_custom_call.1} parent=43 // pred_fallthru
          _
      $region44: #{tpu_custom_call.1} parent=5 // pred_fallthru
        _
      %p288 = scmp.le.s32.totalorder 1, %s21
      %p289 = scmp.lt.s32.totalorder %s21, 3
      %p290 = pnand %p288, %p289
      %p291 = pneg %p290
      // Predicated region
      $region49: #{tpu_custom_call.1} parent=5 // pred_check
        _
      $region50: #{tpu_custom_call.1} parent=5 // pred_check_branch
        %293 = sbr.rel (%p290) target = $region52
      $region51: #{tpu_custom_call.1} parent=5 // pred_region
        %s294 = ssub.s32 %s21, 1
        %s295 = sand.u32 %s34, 1
        %s296 = scalar_lea.sflag [#allocation3], %s295
        %s297 = sand.u32 %s34, 1
        %s298 = smul.addr %s297, 8
        %s299 = scalar_lea.vmem [#allocation2], %s298
        // Predicated region
        $region53: #{tpu_custom_call.1} parent=51 // pred_check
          %p300 = pneg %p47
        $region54: #{tpu_custom_call.1} parent=51 // pred_check_branch
          %302 = sbr.rel (%p300) target = $region56
        $region55: #{tpu_custom_call.1} parent=51 // pred_region
          %303 = dma.done %s296, 128
        $region56: #{tpu_custom_call.1} parent=51 // pred_fallthru
          _
        // Predicated region
        $region57: #{tpu_custom_call.1} parent=51 // pred_check
          %p304 = pneg %p194
        $region58: #{tpu_custom_call.1} parent=51 // pred_check_branch
          %306 = sbr.rel (%p304) target = $region60
        $region59: #{tpu_custom_call.1} parent=51 // pred_region
          %307 = dma.done [#allocation6], 512
        $region60: #{tpu_custom_call.1} parent=51 // pred_fallthru
          _
        %s308 = sand.u32 %s34, 1
        %s309 = scalar_lea.sflag [#allocation3], %s308
        %s310 = sand.u32 %s34, 1
        %s311 = smul.addr %s310, 8
        %s312 = scalar_lea.vmem [#allocation2], %s311
        %p313 = pneg %p47
        %p314 = pneg %p44
        %p315 = pneg %p68
        %p316 = pneg %p65
        %p317 = pneg %p89
        %p318 = pneg %p86
        %p319 = pneg %p110
        %p320 = pneg %p107
        %p321 = pneg %p131
        %p322 = pneg %p128
        %p323 = pneg %p152
        %p324 = pneg %p149
        %p325 = pneg %p173
        %p326 = pneg %p170
        %p327 = pneg %p194
        %p328 = pneg %p191
        %p329 = pneg %p220
        %p330 = pneg %p217
        %s331 = sand.u32 %s207, 1
        %s332 = scalar_lea.sflag [#allocation4], %s331
        %s333 = sand.u32 %s207, 1
        %s334 = smul.addr %s333, 8
        %s335 = scalar_lea.vmem [#allocation7], %s334
        %v336 = vld [vmem:[%s299] sm:$0xff]
        %v337 = vld [vmem:[%s1] sm:$0xff]
        %v338 = vld [vmem:[%s1 + $0x8] sm:$0xff]
        %v339 = vld [vmem:[%s1 + $0x10] sm:$0xff]
        %v340 = vld [vmem:[%s1 + $0x18] sm:$0xff]
        %vm341 = vcmask 261120
        %v343 = vsel %vm341, %v336, 0
        %345 = vmatprep.subr.mxu0 0.0
        %346 = vmatpush1.msra.mxu0 0.0
        %347 = vmatprep.subr.mxu0 0.0
        %348 = vmatpush1.msra.mxu0 0.0
        %349 = vmatprep.subr.mxu0 0.0
        %350 = vmatpush1.msra.mxu0 0.0
        %351 = vmatprep.subr.mxu0 0.0
        %352 = vmatpush1.msra.mxu0 0.0
        %353 = vmatprep.subr.mxu0 0.0
        %354 = vmatpush1.msra.mxu0 0.0
        %355 = vmatprep.subr.mxu0 0.0
        %356 = vmatpush1.msra.mxu0 0.0
        %357 = vmatprep.subr.mxu0 0.0
        %358 = vmatpush1.msra.mxu0 0.0
        %359 = vmatprep.subr.mxu0 0.0
        %360 = vmatpush1.msra.mxu0 0.0
        %361 = vmatprep.subr.mxu0 0.0
        %362 = vmatpush1.msra.mxu0 0.0
        %363 = vmatprep.subr.mxu0 0.0
        %364 = vmatpush1.msra.mxu0 0.0
        %365 = vmatprep.subr.mxu0 0.0
        %366 = vmatpush1.msra.mxu0 0.0
        %367 = vmatprep.subr.mxu0 0.0
        %368 = vmatpush1.msra.mxu0 0.0
        %369 = vmatprep.subr.mxu0 0.0
        %370 = vmatpush1.msra.mxu0 %v340
        %371 = vmatprep.subr.mxu0 0.0
        %372 = vmatpush1.msra.mxu0 %v339
        %373 = vmatprep.subr.mxu0 0.0
        %374 = vmatpush1.msra.mxu0 %v338
        %375 = vmatprep.subr.mxu0 0.0
        %376 = vmatpush1.msra.mxu0 %v337
        %377 = vmatprep.subr.mxu0 0.0
        %378 = vmatpush2.msra.mxu0 0.0
        %379 = vmatprep.subr.mxu0 0.0
        %380 = vmatpush2.msra.mxu0 0.0
        %381 = vmatprep.subr.mxu0 0.0
        %382 = vmatpush2.msra.mxu0 0.0
        %383 = vmatprep.subr.mxu0 0.0
        %384 = vmatpush2.msra.mxu0 0.0
        %385 = vmatprep.subr.mxu0 0.0
        %386 = vmatpush2.msra.mxu0 0.0
        %387 = vmatprep.subr.mxu0 0.0
        %388 = vmatpush2.msra.mxu0 0.0
        %389 = vmatprep.subr.mxu0 0.0
        %390 = vmatpush2.msra.mxu0 0.0
        %391 = vmatprep.subr.mxu0 0.0
        %392 = vmatpush2.msra.mxu0 0.0
        %393 = vmatprep.subr.mxu0 0.0
        %394 = vmatpush2.msra.mxu0 0.0
        %395 = vmatprep.subr.mxu0 0.0
        %396 = vmatpush2.msra.mxu0 0.0
        %397 = vmatprep.subr.mxu0 0.0
        %398 = vmatpush2.msra.mxu0 0.0
        %399 = vmatprep.subr.mxu0 0.0
        %400 = vmatpush2.msra.mxu0 0.0
        %401 = vmatprep.subr.mxu0 0.0
        %402 = vmatpush2.msra.mxu0 0.0
        %403 = vmatprep.subr.mxu0 0.0
        %404 = vmatpush2.msra.mxu0 0.0
        %405 = vmatprep.subr.mxu0 0.0
        %406 = vmatpush2.msra.mxu0 0.0
        %407 = vmatprep.subr.mxu0 0.0
        %408 = vmatpush2.msra.mxu0 0.0
        %409 = vmatprep.mubr.f32.mxu0 0.0
        %410 = vmatmul.mubr.f32.gmra.mxu0 %v343
        %v411 = vpop.f32.mrf.mxu0
        %v412 = vadd.f32 0.0, %v411
        %v413 = vpop.f32.mrf.mxu0
        %414 = vdwg.mxu0
        %416 = vrot.lane.b32.xlu0 %v412, 96
        %v417 = vpop.permute.xlu0 %416
        %vm418 = vcmask 64512
        %v419 = vsel %vm418, %v412, 0
        %v421 = vsel %vm418, %v417, 0
        %423 = vmatprep.subr.mxu0 0.0
        %424 = vmatpush1.xpose.msra.mxu0 0.0
        %425 = vmatprep.subr.mxu0 0.0
        %426 = vmatpush1.xpose.msra.mxu0 0.0
        %427 = vmatprep.subr.mxu0 0.0
        %428 = vmatpush1.xpose.msra.mxu0 0.0
        %429 = vmatprep.subr.mxu0 0.0
        %430 = vmatpush1.xpose.msra.mxu0 0.0
        %431 = vmatprep.subr.mxu0 0.0
        %432 = vmatpush1.xpose.msra.mxu0 0.0
        %433 = vmatprep.subr.mxu0 0.0
        %434 = vmatpush1.xpose.msra.mxu0 0.0
        %435 = vmatprep.subr.mxu0 0.0
        %436 = vmatpush1.xpose.msra.mxu0 0.0
        %437 = vmatprep.subr.mxu0 0.0
        %438 = vmatpush1.xpose.msra.mxu0 0.0
        %439 = vmatprep.subr.mxu0 0.0
        %440 = vmatpush1.xpose.msra.mxu0 0.0
        %441 = vmatprep.subr.mxu0 0.0
        %442 = vmatpush1.xpose.msra.mxu0 0.0
        %443 = vmatprep.subr.mxu0 0.0
        %444 = vmatpush1.xpose.msra.mxu0 0.0
        %445 = vmatprep.subr.mxu0 0.0
        %446 = vmatpush1.xpose.msra.mxu0 0.0
        %447 = vmatprep.subr.mxu0 0.0
        %448 = vmatpush1.xpose.msra.mxu0 0.0
        %449 = vmatprep.subr.mxu0 0.0
        %450 = vmatpush1.xpose.msra.mxu0 0.0
        %451 = vmatprep.subr.mxu0 0.0
        %452 = vmatpush1.xpose.msra.mxu0 0.0
        %453 = vmatprep.subr.mxu0 0.0
        %454 = vmatpush1.xpose.msra.mxu0 %v421
        %455 = vmatprep.subr.mxu0 0.0
        %456 = vmatpush2.xpose.msra.mxu0 0.0
        %457 = vmatprep.subr.mxu0 0.0
        %458 = vmatpush2.xpose.msra.mxu0 0.0
        %459 = vmatprep.subr.mxu0 0.0
        %460 = vmatpush2.xpose.msra.mxu0 0.0
        %461 = vmatprep.subr.mxu0 0.0
        %462 = vmatpush2.xpose.msra.mxu0 0.0
        %463 = vmatprep.subr.mxu0 0.0
        %464 = vmatpush2.xpose.msra.mxu0 0.0
        %465 = vmatprep.subr.mxu0 0.0
        %466 = vmatpush2.xpose.msra.mxu0 0.0
        %467 = vmatprep.subr.mxu0 0.0
        %468 = vmatpush2.xpose.msra.mxu0 0.0
        %469 = vmatprep.subr.mxu0 0.0
        %470 = vmatpush2.xpose.msra.mxu0 0.0
        %471 = vmatprep.subr.mxu0 0.0
        %472 = vmatpush2.xpose.msra.mxu0 0.0
        %473 = vmatprep.subr.mxu0 0.0
        %474 = vmatpush2.xpose.msra.mxu0 0.0
        %475 = vmatprep.subr.mxu0 0.0
        %476 = vmatpush2.xpose.msra.mxu0 0.0
        %477 = vmatprep.subr.mxu0 0.0
        %478 = vmatpush2.xpose.msra.mxu0 0.0
        %479 = vmatprep.subr.mxu0 0.0
        %480 = vmatpush2.xpose.msra.mxu0 0.0
        %481 = vmatprep.subr.mxu0 0.0
        %482 = vmatpush2.xpose.msra.mxu0 0.0
        %483 = vmatprep.subr.mxu0 0.0
        %484 = vmatpush2.xpose.msra.mxu0 0.0
        %485 = vmatprep.subr.mxu0 0.0
        %486 = vmatpush2.xpose.msra.mxu0 0.0
        %487 = vmatprep.mubr.f32.mxu0 0.0
        %488 = vmatmul.mubr.f32.gmra.mxu0 %v419
        %v489 = vpop.f32.mrf.mxu0
        %v490 = vadd.f32 0.0, %v489
        %v491 = vpop.f32.mrf.mxu0
        %492 = vdwg.mxu0
        %v493 = vmul.f32 %v490, 0.35355338
        %v494 = vsel %vm418, %v493, -inf
        %495 = vmax.xlane.f32.xlu0 %v494
        %v496 = vpop.xlane.xlu0 %495
        %v497 = vsub.f32 %v493, %v496
        %v498 = vmul.f32 %v497, 1.442695
        %v499 = vpow.pop %v498
        %v500 = vsel %vm418, %v499, 0.0
        %501 = vadd.xlane.f32.xlu0 %v500
        %v502 = vpop.xlane.xlu0 %501
        %v503 = vrcp.pop %v502
        %v504 = vmul.f32 %v499, %v503
        %505 = vrot.lane.b32.xlu0 %v412, 64
        %v506 = vpop.permute.xlu0 %505
        %v509 = vsel %vm418, %v504, 0
        %511 = vmatprep.subr.mxu0 0.0
        %512 = vmatpush1.msra.mxu0 0.0
        %513 = vmatprep.subr.mxu0 0.0
        %514 = vmatpush1.msra.mxu0 0.0
        %515 = vmatprep.subr.mxu0 0.0
        %516 = vmatpush1.msra.mxu0 0.0
        %517 = vmatprep.subr.mxu0 0.0
        %518 = vmatpush1.msra.mxu0 0.0
        %519 = vmatprep.subr.mxu0 0.0
        %520 = vmatpush1.msra.mxu0 0.0
        %521 = vmatprep.subr.mxu0 0.0
        %522 = vmatpush1.msra.mxu0 0.0
        %523 = vmatprep.subr.mxu0 0.0
        %524 = vmatpush1.msra.mxu0 0.0
        %525 = vmatprep.subr.mxu0 0.0
        %526 = vmatpush1.msra.mxu0 0.0
        %527 = vmatprep.subr.mxu0 0.0
        %528 = vmatpush1.msra.mxu0 0.0
        %529 = vmatprep.subr.mxu0 0.0
        %530 = vmatpush1.msra.mxu0 0.0
        %531 = vmatprep.subr.mxu0 0.0
        %532 = vmatpush1.msra.mxu0 0.0
        %533 = vmatprep.subr.mxu0 0.0
        %534 = vmatpush1.msra.mxu0 0.0
        %535 = vmatprep.subr.mxu0 0.0
        %536 = vmatpush1.msra.mxu0 0.0
        %537 = vmatprep.subr.mxu0 0.0
        %538 = vmatpush1.msra.mxu0 0.0
        %539 = vmatprep.subr.mxu0 0.0
        %540 = vmatpush1.msra.mxu0 0.0
        %541 = vmatprep.subr.mxu0 0.0
        %542 = vmatpush1.msra.mxu0 %v506
        %543 = vmatprep.subr.mxu0 0.0
        %544 = vmatpush2.msra.mxu0 0.0
        %545 = vmatprep.subr.mxu0 0.0
        %546 = vmatpush2.msra.mxu0 0.0
        %547 = vmatprep.subr.mxu0 0.0
        %548 = vmatpush2.msra.mxu0 0.0
        %549 = vmatprep.subr.mxu0 0.0
        %550 = vmatpush2.msra.mxu0 0.0
        %551 = vmatprep.subr.mxu0 0.0
        %552 = vmatpush2.msra.mxu0 0.0
        %553 = vmatprep.subr.mxu0 0.0
        %554 = vmatpush2.msra.mxu0 0.0
        %555 = vmatprep.subr.mxu0 0.0
        %556 = vmatpush2.msra.mxu0 0.0
        %557 = vmatprep.subr.mxu0 0.0
        %558 = vmatpush2.msra.mxu0 0.0
        %559 = vmatprep.subr.mxu0 0.0
        %560 = vmatpush2.msra.mxu0 0.0
        %561 = vmatprep.subr.mxu0 0.0
        %562 = vmatpush2.msra.mxu0 0.0
        %563 = vmatprep.subr.mxu0 0.0
        %564 = vmatpush2.msra.mxu0 0.0
        %565 = vmatprep.subr.mxu0 0.0
        %566 = vmatpush2.msra.mxu0 0.0
        %567 = vmatprep.subr.mxu0 0.0
        %568 = vmatpush2.msra.mxu0 0.0
        %569 = vmatprep.subr.mxu0 0.0
        %570 = vmatpush2.msra.mxu0 0.0
        %571 = vmatprep.subr.mxu0 0.0
        %572 = vmatpush2.msra.mxu0 0.0
        %573 = vmatprep.subr.mxu0 0.0
        %574 = vmatpush2.msra.mxu0 0.0
        %575 = vmatprep.mubr.f32.mxu0 0.0
        %576 = vmatmul.mubr.f32.gmra.mxu0 %v509
        %v577 = vpop.f32.mrf.mxu0
        %v578 = vadd.f32 0.0, %v577
        %v579 = vpop.f32.mrf.mxu0
        %580 = vdwg.mxu0
        %581 = vrot.lane.b32.xlu0 %v412, 120
        %v582 = vpop.permute.xlu0 %581
        %583 = vrot.lane.b32.xlu0 %v412, 88
        %v584 = vpop.permute.xlu0 %583
        %v585 = vsel %vm418, %v582, 0
        %v587 = vsel %vm418, %v584, 0
        %589 = vmatprep.subr.mxu0 0.0
        %590 = vmatpush1.xpose.msra.mxu0 0.0
        %591 = vmatprep.subr.mxu0 0.0
        %592 = vmatpush1.xpose.msra.mxu0 0.0
        %593 = vmatprep.subr.mxu0 0.0
        %594 = vmatpush1.xpose.msra.mxu0 0.0
        %595 = vmatprep.subr.mxu0 0.0
        %596 = vmatpush1.xpose.msra.mxu0 0.0
        %597 = vmatprep.subr.mxu0 0.0
        %598 = vmatpush1.xpose.msra.mxu0 0.0
        %599 = vmatprep.subr.mxu0 0.0
        %600 = vmatpush1.xpose.msra.mxu0 0.0
        %601 = vmatprep.subr.mxu0 0.0
        %602 = vmatpush1.xpose.msra.mxu0 0.0
        %603 = vmatprep.subr.mxu0 0.0
        %604 = vmatpush1.xpose.msra.mxu0 0.0
        %605 = vmatprep.subr.mxu0 0.0
        %606 = vmatpush1.xpose.msra.mxu0 0.0
        %607 = vmatprep.subr.mxu0 0.0
        %608 = vmatpush1.xpose.msra.mxu0 0.0
        %609 = vmatprep.subr.mxu0 0.0
        %610 = vmatpush1.xpose.msra.mxu0 0.0
        %611 = vmatprep.subr.mxu0 0.0
        %612 = vmatpush1.xpose.msra.mxu0 0.0
        %613 = vmatprep.subr.mxu0 0.0
        %614 = vmatpush1.xpose.msra.mxu0 0.0
        %615 = vmatprep.subr.mxu0 0.0
        %616 = vmatpush1.xpose.msra.mxu0 0.0
        %617 = vmatprep.subr.mxu0 0.0
        %618 = vmatpush1.xpose.msra.mxu0 0.0
        %619 = vmatprep.subr.mxu0 0.0
        %620 = vmatpush1.xpose.msra.mxu0 %v587
        %621 = vmatprep.subr.mxu0 0.0
        %622 = vmatpush2.xpose.msra.mxu0 0.0
        %623 = vmatprep.subr.mxu0 0.0
        %624 = vmatpush2.xpose.msra.mxu0 0.0
        %625 = vmatprep.subr.mxu0 0.0
        %626 = vmatpush2.xpose.msra.mxu0 0.0
        %627 = vmatprep.subr.mxu0 0.0
        %628 = vmatpush2.xpose.msra.mxu0 0.0
        %629 = vmatprep.subr.mxu0 0.0
        %630 = vmatpush2.xpose.msra.mxu0 0.0
        %631 = vmatprep.subr.mxu0 0.0
        %632 = vmatpush2.xpose.msra.mxu0 0.0
        %633 = vmatprep.subr.mxu0 0.0
        %634 = vmatpush2.xpose.msra.mxu0 0.0
        %635 = vmatprep.subr.mxu0 0.0
        %636 = vmatpush2.xpose.msra.mxu0 0.0
        %637 = vmatprep.subr.mxu0 0.0
        %638 = vmatpush2.xpose.msra.mxu0 0.0
        %639 = vmatprep.subr.mxu0 0.0
        %640 = vmatpush2.xpose.msra.mxu0 0.0
        %641 = vmatprep.subr.mxu0 0.0
        %642 = vmatpush2.xpose.msra.mxu0 0.0
        %643 = vmatprep.subr.mxu0 0.0
        %644 = vmatpush2.xpose.msra.mxu0 0.0
        %645 = vmatprep.subr.mxu0 0.0
        %646 = vmatpush2.xpose.msra.mxu0 0.0
        %647 = vmatprep.subr.mxu0 0.0
        %648 = vmatpush2.xpose.msra.mxu0 0.0
        %649 = vmatprep.subr.mxu0 0.0
        %650 = vmatpush2.xpose.msra.mxu0 0.0
        %651 = vmatprep.subr.mxu0 0.0
        %652 = vmatpush2.xpose.msra.mxu0 0.0
        %653 = vmatprep.mubr.f32.mxu0 0.0
        %654 = vmatmul.mubr.f32.gmra.mxu0 %v585
        %v655 = vpop.f32.mrf.mxu0
        %v656 = vadd.f32 0.0, %v655
        %v657 = vpop.f32.mrf.mxu0
        %658 = vdwg.mxu0
        %v659 = vmul.f32 %v656, 0.35355338
        %v660 = vsel %vm418, %v659, -inf
        %661 = vmax.xlane.f32.xlu0 %v660
        %v662 = vpop.xlane.xlu0 %661
        %v663 = vsub.f32 %v659, %v662
        %v664 = vmul.f32 %v663, 1.442695
        %v665 = vpow.pop %v664
        %v666 = vsel %vm418, %v665, 0.0
        %667 = vadd.xlane.f32.xlu0 %v666
        %v668 = vpop.xlane.xlu0 %667
        %v669 = vrcp.pop %v668
        %v670 = vmul.f32 %v665, %v669
        %671 = vrot.lane.b32.xlu0 %v412, 56
        %v672 = vpop.permute.xlu0 %671
        %v675 = vsel %vm418, %v670, 0
        %677 = vmatprep.subr.mxu0 0.0
        %678 = vmatpush1.msra.mxu0 0.0
        %679 = vmatprep.subr.mxu0 0.0
        %680 = vmatpush1.msra.mxu0 0.0
        %681 = vmatprep.subr.mxu0 0.0
        %682 = vmatpush1.msra.mxu0 0.0
        %683 = vmatprep.subr.mxu0 0.0
        %684 = vmatpush1.msra.mxu0 0.0
        %685 = vmatprep.subr.mxu0 0.0
        %686 = vmatpush1.msra.mxu0 0.0
        %687 = vmatprep.subr.mxu0 0.0
        %688 = vmatpush1.msra.mxu0 0.0
        %689 = vmatprep.subr.mxu0 0.0
        %690 = vmatpush1.msra.mxu0 0.0
        %691 = vmatprep.subr.mxu0 0.0
        %692 = vmatpush1.msra.mxu0 0.0
        %693 = vmatprep.subr.mxu0 0.0
        %694 = vmatpush1.msra.mxu0 0.0
        %695 = vmatprep.subr.mxu0 0.0
        %696 = vmatpush1.msra.mxu0 0.0
        %697 = vmatprep.subr.mxu0 0.0
        %698 = vmatpush1.msra.mxu0 0.0
        %699 = vmatprep.subr.mxu0 0.0
        %700 = vmatpush1.msra.mxu0 0.0
        %701 = vmatprep.subr.mxu0 0.0
        %702 = vmatpush1.msra.mxu0 0.0
        %703 = vmatprep.subr.mxu0 0.0
        %704 = vmatpush1.msra.mxu0 0.0
        %705 = vmatprep.subr.mxu0 0.0
        %706 = vmatpush1.msra.mxu0 0.0
        %707 = vmatprep.subr.mxu0 0.0
        %708 = vmatpush1.msra.mxu0 %v672
        %709 = vmatprep.subr.mxu0 0.0
        %710 = vmatpush2.msra.mxu0 0.0
        %711 = vmatprep.subr.mxu0 0.0
        %712 = vmatpush2.msra.mxu0 0.0
        %713 = vmatprep.subr.mxu0 0.0
        %714 = vmatpush2.msra.mxu0 0.0
        %715 = vmatprep.subr.mxu0 0.0
        %716 = vmatpush2.msra.mxu0 0.0
        %717 = vmatprep.subr.mxu0 0.0
        %718 = vmatpush2.msra.mxu0 0.0
        %719 = vmatprep.subr.mxu0 0.0
        %720 = vmatpush2.msra.mxu0 0.0
        %721 = vmatprep.subr.mxu0 0.0
        %722 = vmatpush2.msra.mxu0 0.0
        %723 = vmatprep.subr.mxu0 0.0
        %724 = vmatpush2.msra.mxu0 0.0
        %725 = vmatprep.subr.mxu0 0.0
        %726 = vmatpush2.msra.mxu0 0.0
        %727 = vmatprep.subr.mxu0 0.0
        %728 = vmatpush2.msra.mxu0 0.0
        %729 = vmatprep.subr.mxu0 0.0
        %730 = vmatpush2.msra.mxu0 0.0
        %731 = vmatprep.subr.mxu0 0.0
        %732 = vmatpush2.msra.mxu0 0.0
        %733 = vmatprep.subr.mxu0 0.0
        %734 = vmatpush2.msra.mxu0 0.0
        %735 = vmatprep.subr.mxu0 0.0
        %736 = vmatpush2.msra.mxu0 0.0
        %737 = vmatprep.subr.mxu0 0.0
        %738 = vmatpush2.msra.mxu0 0.0
        %739 = vmatprep.subr.mxu0 0.0
        %740 = vmatpush2.msra.mxu0 0.0
        %741 = vmatprep.mubr.f32.mxu0 0.0
        %742 = vmatmul.mubr.f32.gmra.mxu0 %v675
        %v743 = vpop.f32.mrf.mxu0
        %v744 = vadd.f32 0.0, %v743
        %v745 = vpop.f32.mrf.mxu0
        %746 = vdwg.mxu0
        %747 = vrot.lane.b32.xlu0 %v412, 112
        %v748 = vpop.permute.xlu0 %747
        %749 = vrot.lane.b32.xlu0 %v412, 80
        %v750 = vpop.permute.xlu0 %749
        %v751 = vsel %vm418, %v748, 0
        %v753 = vsel %vm418, %v750, 0
        %755 = vmatprep.subr.mxu0 0.0
        %756 = vmatpush1.xpose.msra.mxu0 0.0
        %757 = vmatprep.subr.mxu0 0.0
        %758 = vmatpush1.xpose.msra.mxu0 0.0
        %759 = vmatprep.subr.mxu0 0.0
        %760 = vmatpush1.xpose.msra.mxu0 0.0
        %761 = vmatprep.subr.mxu0 0.0
        %762 = vmatpush1.xpose.msra.mxu0 0.0
        %763 = vmatprep.subr.mxu0 0.0
        %764 = vmatpush1.xpose.msra.mxu0 0.0
        %765 = vmatprep.subr.mxu0 0.0
        %766 = vmatpush1.xpose.msra.mxu0 0.0
        %767 = vmatprep.subr.mxu0 0.0
        %768 = vmatpush1.xpose.msra.mxu0 0.0
        %769 = vmatprep.subr.mxu0 0.0
        %770 = vmatpush1.xpose.msra.mxu0 0.0
        %771 = vmatprep.subr.mxu0 0.0
        %772 = vmatpush1.xpose.msra.mxu0 0.0
        %773 = vmatprep.subr.mxu0 0.0
        %774 = vmatpush1.xpose.msra.mxu0 0.0
        %775 = vmatprep.subr.mxu0 0.0
        %776 = vmatpush1.xpose.msra.mxu0 0.0
        %777 = vmatprep.subr.mxu0 0.0
        %778 = vmatpush1.xpose.msra.mxu0 0.0
        %779 = vmatprep.subr.mxu0 0.0
        %780 = vmatpush1.xpose.msra.mxu0 0.0
        %781 = vmatprep.subr.mxu0 0.0
        %782 = vmatpush1.xpose.msra.mxu0 0.0
        %783 = vmatprep.subr.mxu0 0.0
        %784 = vmatpush1.xpose.msra.mxu0 0.0
        %785 = vmatprep.subr.mxu0 0.0
        %786 = vmatpush1.xpose.msra.mxu0 %v753
        %787 = vmatprep.subr.mxu0 0.0
        %788 = vmatpush2.xpose.msra.mxu0 0.0
        %789 = vmatprep.subr.mxu0 0.0
        %790 = vmatpush2.xpose.msra.mxu0 0.0
        %791 = vmatprep.subr.mxu0 0.0
        %792 = vmatpush2.xpose.msra.mxu0 0.0
        %793 = vmatprep.subr.mxu0 0.0
        %794 = vmatpush2.xpose.msra.mxu0 0.0
        %795 = vmatprep.subr.mxu0 0.0
        %796 = vmatpush2.xpose.msra.mxu0 0.0
        %797 = vmatprep.subr.mxu0 0.0
        %798 = vmatpush2.xpose.msra.mxu0 0.0
        %799 = vmatprep.subr.mxu0 0.0
        %800 = vmatpush2.xpose.msra.mxu0 0.0
        %801 = vmatprep.subr.mxu0 0.0
        %802 = vmatpush2.xpose.msra.mxu0 0.0
        %803 = vmatprep.subr.mxu0 0.0
        %804 = vmatpush2.xpose.msra.mxu0 0.0
        %805 = vmatprep.subr.mxu0 0.0
        %806 = vmatpush2.xpose.msra.mxu0 0.0
        %807 = vmatprep.subr.mxu0 0.0
        %808 = vmatpush2.xpose.msra.mxu0 0.0
        %809 = vmatprep.subr.mxu0 0.0
        %810 = vmatpush2.xpose.msra.mxu0 0.0
        %811 = vmatprep.subr.mxu0 0.0
        %812 = vmatpush2.xpose.msra.mxu0 0.0
        %813 = vmatprep.subr.mxu0 0.0
        %814 = vmatpush2.xpose.msra.mxu0 0.0
        %815 = vmatprep.subr.mxu0 0.0
        %816 = vmatpush2.xpose.msra.mxu0 0.0
        %817 = vmatprep.subr.mxu0 0.0
        %818 = vmatpush2.xpose.msra.mxu0 0.0
        %819 = vmatprep.mubr.f32.mxu0 0.0
        %820 = vmatmul.mubr.f32.gmra.mxu0 %v751
        %v821 = vpop.f32.mrf.mxu0
        %v822 = vadd.f32 0.0, %v821
        %v823 = vpop.f32.mrf.mxu0
        %824 = vdwg.mxu0
        %v825 = vmul.f32 %v822, 0.35355338
        %v826 = vsel %vm418, %v825, -inf
        %827 = vmax.xlane.f32.xlu0 %v826
        %v828 = vpop.xlane.xlu0 %827
        %v829 = vsub.f32 %v825, %v828
        %v830 = vmul.f32 %v829, 1.442695
        %v831 = vpow.pop %v830
        %v832 = vsel %vm418, %v831, 0.0
        %833 = vadd.xlane.f32.xlu0 %v832
        %v834 = vpop.xlane.xlu0 %833
        %v835 = vrcp.pop %v834
        %v836 = vmul.f32 %v831, %v835
        %837 = vrot.lane.b32.xlu0 %v412, 48
        %v838 = vpop.permute.xlu0 %837
        %v841 = vsel %vm418, %v836, 0
        %843 = vmatprep.subr.mxu0 0.0
        %844 = vmatpush1.msra.mxu0 0.0
        %845 = vmatprep.subr.mxu0 0.0
        %846 = vmatpush1.msra.mxu0 0.0
        %847 = vmatprep.subr.mxu0 0.0
        %848 = vmatpush1.msra.mxu0 0.0
        %849 = vmatprep.subr.mxu0 0.0
        %850 = vmatpush1.msra.mxu0 0.0
        %851 = vmatprep.subr.mxu0 0.0
        %852 = vmatpush1.msra.mxu0 0.0
        %853 = vmatprep.subr.mxu0 0.0
        %854 = vmatpush1.msra.mxu0 0.0
        %855 = vmatprep.subr.mxu0 0.0
        %856 = vmatpush1.msra.mxu0 0.0
        %857 = vmatprep.subr.mxu0 0.0
        %858 = vmatpush1.msra.mxu0 0.0
        %859 = vmatprep.subr.mxu0 0.0
        %860 = vmatpush1.msra.mxu0 0.0
        %861 = vmatprep.subr.mxu0 0.0
        %862 = vmatpush1.msra.mxu0 0.0
        %863 = vmatprep.subr.mxu0 0.0
        %864 = vmatpush1.msra.mxu0 0.0
        %865 = vmatprep.subr.mxu0 0.0
        %866 = vmatpush1.msra.mxu0 0.0
        %867 = vmatprep.subr.mxu0 0.0
        %868 = vmatpush1.msra.mxu0 0.0
        %869 = vmatprep.subr.mxu0 0.0
        %870 = vmatpush1.msra.mxu0 0.0
        %871 = vmatprep.subr.mxu0 0.0
        %872 = vmatpush1.msra.mxu0 0.0
        %873 = vmatprep.subr.mxu0 0.0
        %874 = vmatpush1.msra.mxu0 %v838
        %875 = vmatprep.subr.mxu0 0.0
        %876 = vmatpush2.msra.mxu0 0.0
        %877 = vmatprep.subr.mxu0 0.0
        %878 = vmatpush2.msra.mxu0 0.0
        %879 = vmatprep.subr.mxu0 0.0
        %880 = vmatpush2.msra.mxu0 0.0
        %881 = vmatprep.subr.mxu0 0.0
        %882 = vmatpush2.msra.mxu0 0.0
        %883 = vmatprep.subr.mxu0 0.0
        %884 = vmatpush2.msra.mxu0 0.0
        %885 = vmatprep.subr.mxu0 0.0
        %886 = vmatpush2.msra.mxu0 0.0
        %887 = vmatprep.subr.mxu0 0.0
        %888 = vmatpush2.msra.mxu0 0.0
        %889 = vmatprep.subr.mxu0 0.0
        %890 = vmatpush2.msra.mxu0 0.0
        %891 = vmatprep.subr.mxu0 0.0
        %892 = vmatpush2.msra.mxu0 0.0
        %893 = vmatprep.subr.mxu0 0.0
        %894 = vmatpush2.msra.mxu0 0.0
        %895 = vmatprep.subr.mxu0 0.0
        %896 = vmatpush2.msra.mxu0 0.0
        %897 = vmatprep.subr.mxu0 0.0
        %898 = vmatpush2.msra.mxu0 0.0
        %899 = vmatprep.subr.mxu0 0.0
        %900 = vmatpush2.msra.mxu0 0.0
        %901 = vmatprep.subr.mxu0 0.0
        %902 = vmatpush2.msra.mxu0 0.0
        %903 = vmatprep.subr.mxu0 0.0
        %904 = vmatpush2.msra.mxu0 0.0
        %905 = vmatprep.subr.mxu0 0.0
        %906 = vmatpush2.msra.mxu0 0.0
        %907 = vmatprep.mubr.f32.mxu0 0.0
        %908 = vmatmul.mubr.f32.gmra.mxu0 %v841
        %v909 = vpop.f32.mrf.mxu0
        %v910 = vadd.f32 0.0, %v909
        %v911 = vpop.f32.mrf.mxu0
        %912 = vdwg.mxu0
        %913 = vrot.lane.b32.xlu0 %v412, 104
        %v914 = vpop.permute.xlu0 %913
        %915 = vrot.lane.b32.xlu0 %v412, 72
        %v916 = vpop.permute.xlu0 %915
        %v917 = vsel %vm418, %v914, 0
        %v919 = vsel %vm418, %v916, 0
        %921 = vmatprep.subr.mxu0 0.0
        %922 = vmatpush1.xpose.msra.mxu0 0.0
        %923 = vmatprep.subr.mxu0 0.0
        %924 = vmatpush1.xpose.msra.mxu0 0.0
        %925 = vmatprep.subr.mxu0 0.0
        %926 = vmatpush1.xpose.msra.mxu0 0.0
        %927 = vmatprep.subr.mxu0 0.0
        %928 = vmatpush1.xpose.msra.mxu0 0.0
        %929 = vmatprep.subr.mxu0 0.0
        %930 = vmatpush1.xpose.msra.mxu0 0.0
        %931 = vmatprep.subr.mxu0 0.0
        %932 = vmatpush1.xpose.msra.mxu0 0.0
        %933 = vmatprep.subr.mxu0 0.0
        %934 = vmatpush1.xpose.msra.mxu0 0.0
        %935 = vmatprep.subr.mxu0 0.0
        %936 = vmatpush1.xpose.msra.mxu0 0.0
        %937 = vmatprep.subr.mxu0 0.0
        %938 = vmatpush1.xpose.msra.mxu0 0.0
        %939 = vmatprep.subr.mxu0 0.0
        %940 = vmatpush1.xpose.msra.mxu0 0.0
        %941 = vmatprep.subr.mxu0 0.0
        %942 = vmatpush1.xpose.msra.mxu0 0.0
        %943 = vmatprep.subr.mxu0 0.0
        %944 = vmatpush1.xpose.msra.mxu0 0.0
        %945 = vmatprep.subr.mxu0 0.0
        %946 = vmatpush1.xpose.msra.mxu0 0.0
        %947 = vmatprep.subr.mxu0 0.0
        %948 = vmatpush1.xpose.msra.mxu0 0.0
        %949 = vmatprep.subr.mxu0 0.0
        %950 = vmatpush1.xpose.msra.mxu0 0.0
        %951 = vmatprep.subr.mxu0 0.0
        %952 = vmatpush1.xpose.msra.mxu0 %v919
        %953 = vmatprep.subr.mxu0 0.0
        %954 = vmatpush2.xpose.msra.mxu0 0.0
        %955 = vmatprep.subr.mxu0 0.0
        %956 = vmatpush2.xpose.msra.mxu0 0.0
        %957 = vmatprep.subr.mxu0 0.0
        %958 = vmatpush2.xpose.msra.mxu0 0.0
        %959 = vmatprep.subr.mxu0 0.0
        %960 = vmatpush2.xpose.msra.mxu0 0.0
        %961 = vmatprep.subr.mxu0 0.0
        %962 = vmatpush2.xpose.msra.mxu0 0.0
        %963 = vmatprep.subr.mxu0 0.0
        %964 = vmatpush2.xpose.msra.mxu0 0.0
        %965 = vmatprep.subr.mxu0 0.0
        %966 = vmatpush2.xpose.msra.mxu0 0.0
        %967 = vmatprep.subr.mxu0 0.0
        %968 = vmatpush2.xpose.msra.mxu0 0.0
        %969 = vmatprep.subr.mxu0 0.0
        %970 = vmatpush2.xpose.msra.mxu0 0.0
        %971 = vmatprep.subr.mxu0 0.0
        %972 = vmatpush2.xpose.msra.mxu0 0.0
        %973 = vmatprep.subr.mxu0 0.0
        %974 = vmatpush2.xpose.msra.mxu0 0.0
        %975 = vmatprep.subr.mxu0 0.0
        %976 = vmatpush2.xpose.msra.mxu0 0.0
        %977 = vmatprep.subr.mxu0 0.0
        %978 = vmatpush2.xpose.msra.mxu0 0.0
        %979 = vmatprep.subr.mxu0 0.0
        %980 = vmatpush2.xpose.msra.mxu0 0.0
        %981 = vmatprep.subr.mxu0 0.0
        %982 = vmatpush2.xpose.msra.mxu0 0.0
        %983 = vmatprep.subr.mxu0 0.0
        %984 = vmatpush2.xpose.msra.mxu0 0.0
        %985 = vmatprep.mubr.f32.mxu0 0.0
        %986 = vmatmul.mubr.f32.gmra.mxu0 %v917
        %v987 = vpop.f32.mrf.mxu0
        %v988 = vadd.f32 0.0, %v987
        %v989 = vpop.f32.mrf.mxu0
        %990 = vdwg.mxu0
        %v991 = vmul.f32 %v988, 0.35355338
        %v992 = vsel %vm418, %v991, -inf
        %993 = vmax.xlane.f32.xlu0 %v992
        %v994 = vpop.xlane.xlu0 %993
        %v995 = vsub.f32 %v991, %v994
        %v996 = vmul.f32 %v995, 1.442695
        %v997 = vpow.pop %v996
        %v998 = vsel %vm418, %v997, 0.0
        %999 = vadd.xlane.f32.xlu0 %v998
        %v1000 = vpop.xlane.xlu0 %999
        %v1001 = vrcp.pop %v1000
        %v1002 = vmul.f32 %v997, %v1001
        %1003 = vrot.lane.b32.xlu0 %v412, 40
        %v1004 = vpop.permute.xlu0 %1003
        %v1007 = vsel %vm418, %v1002, 0
        %1009 = vmatprep.subr.mxu0 0.0
        %1010 = vmatpush1.msra.mxu0 0.0
        %1011 = vmatprep.subr.mxu0 0.0
        %1012 = vmatpush1.msra.mxu0 0.0
        %1013 = vmatprep.subr.mxu0 0.0
        %1014 = vmatpush1.msra.mxu0 0.0
        %1015 = vmatprep.subr.mxu0 0.0
        %1016 = vmatpush1.msra.mxu0 0.0
        %1017 = vmatprep.subr.mxu0 0.0
        %1018 = vmatpush1.msra.mxu0 0.0
        %1019 = vmatprep.subr.mxu0 0.0
        %1020 = vmatpush1.msra.mxu0 0.0
        %1021 = vmatprep.subr.mxu0 0.0
        %1022 = vmatpush1.msra.mxu0 0.0
        %1023 = vmatprep.subr.mxu0 0.0
        %1024 = vmatpush1.msra.mxu0 0.0
        %1025 = vmatprep.subr.mxu0 0.0
        %1026 = vmatpush1.msra.mxu0 0.0
        %1027 = vmatprep.subr.mxu0 0.0
        %1028 = vmatpush1.msra.mxu0 0.0
        %1029 = vmatprep.subr.mxu0 0.0
        %1030 = vmatpush1.msra.mxu0 0.0
        %1031 = vmatprep.subr.mxu0 0.0
        %1032 = vmatpush1.msra.mxu0 0.0
        %1033 = vmatprep.subr.mxu0 0.0
        %1034 = vmatpush1.msra.mxu0 0.0
        %1035 = vmatprep.subr.mxu0 0.0
        %1036 = vmatpush1.msra.mxu0 0.0
        %1037 = vmatprep.subr.mxu0 0.0
        %1038 = vmatpush1.msra.mxu0 0.0
        %1039 = vmatprep.subr.mxu0 0.0
        %1040 = vmatpush1.msra.mxu0 %v1004
        %1041 = vmatprep.subr.mxu0 0.0
        %1042 = vmatpush2.msra.mxu0 0.0
        %1043 = vmatprep.subr.mxu0 0.0
        %1044 = vmatpush2.msra.mxu0 0.0
        %1045 = vmatprep.subr.mxu0 0.0
        %1046 = vmatpush2.msra.mxu0 0.0
        %1047 = vmatprep.subr.mxu0 0.0
        %1048 = vmatpush2.msra.mxu0 0.0
        %1049 = vmatprep.subr.mxu0 0.0
        %1050 = vmatpush2.msra.mxu0 0.0
        %1051 = vmatprep.subr.mxu0 0.0
        %1052 = vmatpush2.msra.mxu0 0.0
        %1053 = vmatprep.subr.mxu0 0.0
        %1054 = vmatpush2.msra.mxu0 0.0
        %1055 = vmatprep.subr.mxu0 0.0
        %1056 = vmatpush2.msra.mxu0 0.0
        %1057 = vmatprep.subr.mxu0 0.0
        %1058 = vmatpush2.msra.mxu0 0.0
        %1059 = vmatprep.subr.mxu0 0.0
        %1060 = vmatpush2.msra.mxu0 0.0
        %1061 = vmatprep.subr.mxu0 0.0
        %1062 = vmatpush2.msra.mxu0 0.0
        %1063 = vmatprep.subr.mxu0 0.0
        %1064 = vmatpush2.msra.mxu0 0.0
        %1065 = vmatprep.subr.mxu0 0.0
        %1066 = vmatpush2.msra.mxu0 0.0
        %1067 = vmatprep.subr.mxu0 0.0
        %1068 = vmatpush2.msra.mxu0 0.0
        %1069 = vmatprep.subr.mxu0 0.0
        %1070 = vmatpush2.msra.mxu0 0.0
        %1071 = vmatprep.subr.mxu0 0.0
        %1072 = vmatpush2.msra.mxu0 0.0
        %1073 = vmatprep.mubr.f32.mxu0 0.0
        %1074 = vmatmul.mubr.f32.gmra.mxu0 %v1007
        %v1075 = vpop.f32.mrf.mxu0
        %v1076 = vadd.f32 0.0, %v1075
        %v1077 = vpop.f32.mrf.mxu0
        %1078 = vdwg.mxu0
        %1080 = vrot.lane.b32.xlu0 %v744, 8
        %v1081 = vpop.permute.xlu0 %1080
        %1084 = vrot.lane.b32.xlu0 %v910, 16
        %v1085 = vpop.permute.xlu0 %1084
        %1088 = vrot.lane.b32.xlu0 %v1076, 24
        %v1089 = vpop.permute.xlu0 %1088
        %v1091 = vsel %vm418, %v578, %v1081
        %vm1092 = vcmask 130048
        %v1093 = vsel %vm1092, %v1091, %v1085
        %vm1094 = vcmask 195584
        %v1095 = vsel %vm1094, %v1093, %v1089
        %v1096 = vld [vmem:[%s2] sm:$0xff]
        %v1097 = vld [vmem:[%s2 + $0x8] sm:$0xff]
        %v1098 = vld [vmem:[%s2 + $0x10] sm:$0xff]
        %v1099 = vld [vmem:[%s2 + $0x18] sm:$0xff]
        %v1101 = vsel %vm341, %v1095, 0
        %1103 = vmatprep.subr.mxu0 0.0
        %1104 = vmatpush1.msra.mxu0 0.0
        %1105 = vmatprep.subr.mxu0 0.0
        %1106 = vmatpush1.msra.mxu0 0.0
        %1107 = vmatprep.subr.mxu0 0.0
        %1108 = vmatpush1.msra.mxu0 0.0
        %1109 = vmatprep.subr.mxu0 0.0
        %1110 = vmatpush1.msra.mxu0 0.0
        %1111 = vmatprep.subr.mxu0 0.0
        %1112 = vmatpush1.msra.mxu0 0.0
        %1113 = vmatprep.subr.mxu0 0.0
        %1114 = vmatpush1.msra.mxu0 0.0
        %1115 = vmatprep.subr.mxu0 0.0
        %1116 = vmatpush1.msra.mxu0 0.0
        %1117 = vmatprep.subr.mxu0 0.0
        %1118 = vmatpush1.msra.mxu0 0.0
        %1119 = vmatprep.subr.mxu0 0.0
        %1120 = vmatpush1.msra.mxu0 0.0
        %1121 = vmatprep.subr.mxu0 0.0
        %1122 = vmatpush1.msra.mxu0 0.0
        %1123 = vmatprep.subr.mxu0 0.0
        %1124 = vmatpush1.msra.mxu0 0.0
        %1125 = vmatprep.subr.mxu0 0.0
        %1126 = vmatpush1.msra.mxu0 0.0
        %1127 = vmatprep.subr.mxu0 0.0
        %1128 = vmatpush1.msra.mxu0 %v1099
        %1129 = vmatprep.subr.mxu0 0.0
        %1130 = vmatpush1.msra.mxu0 %v1098
        %1131 = vmatprep.subr.mxu0 0.0
        %1132 = vmatpush1.msra.mxu0 %v1097
        %1133 = vmatprep.subr.mxu0 0.0
        %1134 = vmatpush1.msra.mxu0 %v1096
        %1135 = vmatprep.subr.mxu0 0.0
        %1136 = vmatpush2.msra.mxu0 0.0
        %1137 = vmatprep.subr.mxu0 0.0
        %1138 = vmatpush2.msra.mxu0 0.0
        %1139 = vmatprep.subr.mxu0 0.0
        %1140 = vmatpush2.msra.mxu0 0.0
        %1141 = vmatprep.subr.mxu0 0.0
        %1142 = vmatpush2.msra.mxu0 0.0
        %1143 = vmatprep.subr.mxu0 0.0
        %1144 = vmatpush2.msra.mxu0 0.0
        %1145 = vmatprep.subr.mxu0 0.0
        %1146 = vmatpush2.msra.mxu0 0.0
        %1147 = vmatprep.subr.mxu0 0.0
        %1148 = vmatpush2.msra.mxu0 0.0
        %1149 = vmatprep.subr.mxu0 0.0
        %1150 = vmatpush2.msra.mxu0 0.0
        %1151 = vmatprep.subr.mxu0 0.0
        %1152 = vmatpush2.msra.mxu0 0.0
        %1153 = vmatprep.subr.mxu0 0.0
        %1154 = vmatpush2.msra.mxu0 0.0
        %1155 = vmatprep.subr.mxu0 0.0
        %1156 = vmatpush2.msra.mxu0 0.0
        %1157 = vmatprep.subr.mxu0 0.0
        %1158 = vmatpush2.msra.mxu0 0.0
        %1159 = vmatprep.subr.mxu0 0.0
        %1160 = vmatpush2.msra.mxu0 0.0
        %1161 = vmatprep.subr.mxu0 0.0
        %1162 = vmatpush2.msra.mxu0 0.0
        %1163 = vmatprep.subr.mxu0 0.0
        %1164 = vmatpush2.msra.mxu0 0.0
        %1165 = vmatprep.subr.mxu0 0.0
        %1166 = vmatpush2.msra.mxu0 0.0
        %1167 = vmatprep.mubr.f32.mxu0 0.0
        %1168 = vmatmul.mubr.f32.gmra.mxu0 %v1101
        %v1169 = vpop.f32.mrf.mxu0
        %v1170 = vadd.f32 0.0, %v1169
        %v1171 = vpop.f32.mrf.mxu0
        %1172 = vdwg.mxu0
        %v1173 = vadd.f32 %v336, %v1170
        %v1174 = vld [vmem:[%s3] sm:$0xff]
        %v1175 = vld [vmem:[%s3 + $0x8] sm:$0xff]
        %v1176 = vld [vmem:[%s3 + $0x10] sm:$0xff]
        %v1177 = vld [vmem:[%s3 + $0x18] sm:$0xff]
        %v1178 = vld [vmem:[%s4] sm:$0x1]
        %v1180 = vlaneseq
        %v1181 = vshrl.u32 %v1180, 7
        %v1182 = vsub.s32 0, %v1181
        %v1183 = vrot.slane %v1178, %v1182
        %v1186 = vsel %vm341, %v1173, 0
        %1188 = vmatprep.subr.mxu0 0.0
        %1189 = vmatpush1.msra.mxu0 0.0
        %1190 = vmatprep.subr.mxu0 0.0
        %1191 = vmatpush1.msra.mxu0 0.0
        %1192 = vmatprep.subr.mxu0 0.0
        %1193 = vmatpush1.msra.mxu0 0.0
        %1194 = vmatprep.subr.mxu0 0.0
        %1195 = vmatpush1.msra.mxu0 0.0
        %1196 = vmatprep.subr.mxu0 0.0
        %1197 = vmatpush1.msra.mxu0 0.0
        %1198 = vmatprep.subr.mxu0 0.0
        %1199 = vmatpush1.msra.mxu0 0.0
        %1200 = vmatprep.subr.mxu0 0.0
        %1201 = vmatpush1.msra.mxu0 0.0
        %1202 = vmatprep.subr.mxu0 0.0
        %1203 = vmatpush1.msra.mxu0 0.0
        %1204 = vmatprep.subr.mxu0 0.0
        %1205 = vmatpush1.msra.mxu0 0.0
        %1206 = vmatprep.subr.mxu0 0.0
        %1207 = vmatpush1.msra.mxu0 0.0
        %1208 = vmatprep.subr.mxu0 0.0
        %1209 = vmatpush1.msra.mxu0 0.0
        %1210 = vmatprep.subr.mxu0 0.0
        %1211 = vmatpush1.msra.mxu0 0.0
        %1212 = vmatprep.subr.mxu0 0.0
        %1213 = vmatpush1.msra.mxu0 %v1177
        %1214 = vmatprep.subr.mxu0 0.0
        %1215 = vmatpush1.msra.mxu0 %v1176
        %1216 = vmatprep.subr.mxu0 0.0
        %1217 = vmatpush1.msra.mxu0 %v1175
        %1218 = vmatprep.subr.mxu0 0.0
        %1219 = vmatpush1.msra.mxu0 %v1174
        %1220 = vmatprep.subr.mxu0 0.0
        %1221 = vmatpush2.msra.mxu0 0.0
        %1222 = vmatprep.subr.mxu0 0.0
        %1223 = vmatpush2.msra.mxu0 0.0
        %1224 = vmatprep.subr.mxu0 0.0
        %1225 = vmatpush2.msra.mxu0 0.0
        %1226 = vmatprep.subr.mxu0 0.0
        %1227 = vmatpush2.msra.mxu0 0.0
        %1228 = vmatprep.subr.mxu0 0.0
        %1229 = vmatpush2.msra.mxu0 0.0
        %1230 = vmatprep.subr.mxu0 0.0
        %1231 = vmatpush2.msra.mxu0 0.0
        %1232 = vmatprep.subr.mxu0 0.0
        %1233 = vmatpush2.msra.mxu0 0.0
        %1234 = vmatprep.subr.mxu0 0.0
        %1235 = vmatpush2.msra.mxu0 0.0
        %1236 = vmatprep.subr.mxu0 0.0
        %1237 = vmatpush2.msra.mxu0 0.0
        %1238 = vmatprep.subr.mxu0 0.0
        %1239 = vmatpush2.msra.mxu0 0.0
        %1240 = vmatprep.subr.mxu0 0.0
        %1241 = vmatpush2.msra.mxu0 0.0
        %1242 = vmatprep.subr.mxu0 0.0
        %1243 = vmatpush2.msra.mxu0 0.0
        %1244 = vmatprep.subr.mxu0 0.0
        %1245 = vmatpush2.msra.mxu0 0.0
        %1246 = vmatprep.subr.mxu0 0.0
        %1247 = vmatpush2.msra.mxu0 0.0
        %1248 = vmatprep.subr.mxu0 0.0
        %1249 = vmatpush2.msra.mxu0 0.0
        %1250 = vmatprep.subr.mxu0 0.0
        %1251 = vmatpush2.msra.mxu0 0.0
        %1252 = vmatprep.mubr.f32.mxu0 0.0
        %1253 = vmatmul.mubr.f32.gmra.mxu0 %v1186
        %v1254 = vpop.f32.mrf.mxu0
        %v1255 = vadd.f32 %v1183, %v1254
        %v1256 = vpop.f32.mrf.mxu0
        %1257 = vdwg.mxu0
        %v1258 = vmax.f32 %v1255, 0.0
        %v1259 = vld [vmem:[%s5] sm:$0xff]
        %v1260 = vld [vmem:[%s5 + $0x8] sm:$0xff]
        %v1261 = vld [vmem:[%s5 + $0x10] sm:$0xff]
        %v1262 = vld [vmem:[%s5 + $0x18] sm:$0xff]
        %v1263 = vld [vmem:[%s5 + $0x20] sm:$0xff]
        %v1264 = vld [vmem:[%s5 + $0x28] sm:$0xff]
        %v1265 = vld [vmem:[%s5 + $0x30] sm:$0xff]
        %v1266 = vld [vmem:[%s5 + $0x38] sm:$0xff]
        %v1267 = vld [vmem:[%s6] sm:$0x1]
        %v1269 = vlaneseq
        %v1270 = vshrl.u32 %v1269, 7
        %v1271 = vsub.s32 0, %v1270
        %v1272 = vrot.slane %v1267, %v1271
        %vm1274 = vcmask 523264
        %v1276 = vsel %vm1274, %v1258, 0
        %1278 = vmatprep.subr.mxu0 0.0
        %1279 = vmatpush1.msra.mxu0 0.0
        %1280 = vmatprep.subr.mxu0 0.0
        %1281 = vmatpush1.msra.mxu0 0.0
        %1282 = vmatprep.subr.mxu0 0.0
        %1283 = vmatpush1.msra.mxu0 0.0
        %1284 = vmatprep.subr.mxu0 0.0
        %1285 = vmatpush1.msra.mxu0 0.0
        %1286 = vmatprep.subr.mxu0 0.0
        %1287 = vmatpush1.msra.mxu0 0.0
        %1288 = vmatprep.subr.mxu0 0.0
        %1289 = vmatpush1.msra.mxu0 0.0
        %1290 = vmatprep.subr.mxu0 0.0
        %1291 = vmatpush1.msra.mxu0 0.0
        %1292 = vmatprep.subr.mxu0 0.0
        %1293 = vmatpush1.msra.mxu0 0.0
        %1294 = vmatprep.subr.mxu0 0.0
        %1295 = vmatpush1.msra.mxu0 %v1266
        %1296 = vmatprep.subr.mxu0 0.0
        %1297 = vmatpush1.msra.mxu0 %v1265
        %1298 = vmatprep.subr.mxu0 0.0
        %1299 = vmatpush1.msra.mxu0 %v1264
        %1300 = vmatprep.subr.mxu0 0.0
        %1301 = vmatpush1.msra.mxu0 %v1263
        %1302 = vmatprep.subr.mxu0 0.0
        %1303 = vmatpush1.msra.mxu0 %v1262
        %1304 = vmatprep.subr.mxu0 0.0
        %1305 = vmatpush1.msra.mxu0 %v1261
        %1306 = vmatprep.subr.mxu0 0.0
        %1307 = vmatpush1.msra.mxu0 %v1260
        %1308 = vmatprep.subr.mxu0 0.0
        %1309 = vmatpush1.msra.mxu0 %v1259
        %1310 = vmatprep.subr.mxu0 0.0
        %1311 = vmatpush2.msra.mxu0 0.0
        %1312 = vmatprep.subr.mxu0 0.0
        %1313 = vmatpush2.msra.mxu0 0.0
        %1314 = vmatprep.subr.mxu0 0.0
        %1315 = vmatpush2.msra.mxu0 0.0
        %1316 = vmatprep.subr.mxu0 0.0
        %1317 = vmatpush2.msra.mxu0 0.0
        %1318 = vmatprep.subr.mxu0 0.0
        %1319 = vmatpush2.msra.mxu0 0.0
        %1320 = vmatprep.subr.mxu0 0.0
        %1321 = vmatpush2.msra.mxu0 0.0
        %1322 = vmatprep.subr.mxu0 0.0
        %1323 = vmatpush2.msra.mxu0 0.0
        %1324 = vmatprep.subr.mxu0 0.0
        %1325 = vmatpush2.msra.mxu0 0.0
        %1326 = vmatprep.subr.mxu0 0.0
        %1327 = vmatpush2.msra.mxu0 0.0
        %1328 = vmatprep.subr.mxu0 0.0
        %1329 = vmatpush2.msra.mxu0 0.0
        %1330 = vmatprep.subr.mxu0 0.0
        %1331 = vmatpush2.msra.mxu0 0.0
        %1332 = vmatprep.subr.mxu0 0.0
        %1333 = vmatpush2.msra.mxu0 0.0
        %1334 = vmatprep.subr.mxu0 0.0
        %1335 = vmatpush2.msra.mxu0 0.0
        %1336 = vmatprep.subr.mxu0 0.0
        %1337 = vmatpush2.msra.mxu0 0.0
        %1338 = vmatprep.subr.mxu0 0.0
        %1339 = vmatpush2.msra.mxu0 0.0
        %1340 = vmatprep.subr.mxu0 0.0
        %1341 = vmatpush2.msra.mxu0 0.0
        %1342 = vmatprep.mubr.f32.mxu0 0.0
        %1343 = vmatmul.mubr.f32.gmra.mxu0 %v1276
        %v1344 = vpop.f32.mrf.mxu0
        %v1345 = vadd.f32 %v1272, %v1344
        %v1346 = vpop.f32.mrf.mxu0
        %1347 = vdwg.mxu0
        %v1348 = vadd.f32 %v1173, %v1345
        %s1349 = scalar_lea.vmem %s1, 32
        %v1350 = vld [vmem:[%s1349] sm:$0xff]
        %v1351 = vld [vmem:[%s1349 + $0x8] sm:$0xff]
        %v1352 = vld [vmem:[%s1349 + $0x10] sm:$0xff]
        %v1353 = vld [vmem:[%s1349 + $0x18] sm:$0xff]
        %v1355 = vsel %vm341, %v1348, 0
        %1357 = vmatprep.subr.mxu0 0.0
        %1358 = vmatpush1.msra.mxu0 0.0
        %1359 = vmatprep.subr.mxu0 0.0
        %1360 = vmatpush1.msra.mxu0 0.0
        %1361 = vmatprep.subr.mxu0 0.0
        %1362 = vmatpush1.msra.mxu0 0.0
        %1363 = vmatprep.subr.mxu0 0.0
        %1364 = vmatpush1.msra.mxu0 0.0
        %1365 = vmatprep.subr.mxu0 0.0
        %1366 = vmatpush1.msra.mxu0 0.0
        %1367 = vmatprep.subr.mxu0 0.0
        %1368 = vmatpush1.msra.mxu0 0.0
        %1369 = vmatprep.subr.mxu0 0.0
        %1370 = vmatpush1.msra.mxu0 0.0
        %1371 = vmatprep.subr.mxu0 0.0
        %1372 = vmatpush1.msra.mxu0 0.0
        %1373 = vmatprep.subr.mxu0 0.0
        %1374 = vmatpush1.msra.mxu0 0.0
        %1375 = vmatprep.subr.mxu0 0.0
        %1376 = vmatpush1.msra.mxu0 0.0
        %1377 = vmatprep.subr.mxu0 0.0
        %1378 = vmatpush1.msra.mxu0 0.0
        %1379 = vmatprep.subr.mxu0 0.0
        %1380 = vmatpush1.msra.mxu0 0.0
        %1381 = vmatprep.subr.mxu0 0.0
        %1382 = vmatpush1.msra.mxu0 %v1353
        %1383 = vmatprep.subr.mxu0 0.0
        %1384 = vmatpush1.msra.mxu0 %v1352
        %1385 = vmatprep.subr.mxu0 0.0
        %1386 = vmatpush1.msra.mxu0 %v1351
        %1387 = vmatprep.subr.mxu0 0.0
        %1388 = vmatpush1.msra.mxu0 %v1350
        %1389 = vmatprep.subr.mxu0 0.0
        %1390 = vmatpush2.msra.mxu0 0.0
        %1391 = vmatprep.subr.mxu0 0.0
        %1392 = vmatpush2.msra.mxu0 0.0
        %1393 = vmatprep.subr.mxu0 0.0
        %1394 = vmatpush2.msra.mxu0 0.0
        %1395 = vmatprep.subr.mxu0 0.0
        %1396 = vmatpush2.msra.mxu0 0.0
        %1397 = vmatprep.subr.mxu0 0.0
        %1398 = vmatpush2.msra.mxu0 0.0
        %1399 = vmatprep.subr.mxu0 0.0
        %1400 = vmatpush2.msra.mxu0 0.0
        %1401 = vmatprep.subr.mxu0 0.0
        %1402 = vmatpush2.msra.mxu0 0.0
        %1403 = vmatprep.subr.mxu0 0.0
        %1404 = vmatpush2.msra.mxu0 0.0
        %1405 = vmatprep.subr.mxu0 0.0
        %1406 = vmatpush2.msra.mxu0 0.0
        %1407 = vmatprep.subr.mxu0 0.0
        %1408 = vmatpush2.msra.mxu0 0.0
        %1409 = vmatprep.subr.mxu0 0.0
        %1410 = vmatpush2.msra.mxu0 0.0
        %1411 = vmatprep.subr.mxu0 0.0
        %1412 = vmatpush2.msra.mxu0 0.0
        %1413 = vmatprep.subr.mxu0 0.0
        %1414 = vmatpush2.msra.mxu0 0.0
        %1415 = vmatprep.subr.mxu0 0.0
        %1416 = vmatpush2.msra.mxu0 0.0
        %1417 = vmatprep.subr.mxu0 0.0
        %1418 = vmatpush2.msra.mxu0 0.0
        %1419 = vmatprep.subr.mxu0 0.0
        %1420 = vmatpush2.msra.mxu0 0.0
        %1421 = vmatprep.mubr.f32.mxu0 0.0
        %1422 = vmatmul.mubr.f32.gmra.mxu0 %v1355
        %v1423 = vpop.f32.mrf.mxu0
        %v1424 = vadd.f32 0.0, %v1423
        %v1425 = vpop.f32.mrf.mxu0
        %1426 = vdwg.mxu0
        %1428 = vrot.lane.b32.xlu0 %v1424, 96
        %v1429 = vpop.permute.xlu0 %1428
        %v1430 = vsel %vm418, %v1424, 0
        %v1432 = vsel %vm418, %v1429, 0
        %1434 = vmatprep.subr.mxu0 0.0
        %1435 = vmatpush1.xpose.msra.mxu0 0.0
        %1436 = vmatprep.subr.mxu0 0.0
        %1437 = vmatpush1.xpose.msra.mxu0 0.0
        %1438 = vmatprep.subr.mxu0 0.0
        %1439 = vmatpush1.xpose.msra.mxu0 0.0
        %1440 = vmatprep.subr.mxu0 0.0
        %1441 = vmatpush1.xpose.msra.mxu0 0.0
        %1442 = vmatprep.subr.mxu0 0.0
        %1443 = vmatpush1.xpose.msra.mxu0 0.0
        %1444 = vmatprep.subr.mxu0 0.0
        %1445 = vmatpush1.xpose.msra.mxu0 0.0
        %1446 = vmatprep.subr.mxu0 0.0
        %1447 = vmatpush1.xpose.msra.mxu0 0.0
        %1448 = vmatprep.subr.mxu0 0.0
        %1449 = vmatpush1.xpose.msra.mxu0 0.0
        %1450 = vmatprep.subr.mxu0 0.0
        %1451 = vmatpush1.xpose.msra.mxu0 0.0
        %1452 = vmatprep.subr.mxu0 0.0
        %1453 = vmatpush1.xpose.msra.mxu0 0.0
        %1454 = vmatprep.subr.mxu0 0.0
        %1455 = vmatpush1.xpose.msra.mxu0 0.0
        %1456 = vmatprep.subr.mxu0 0.0
        %1457 = vmatpush1.xpose.msra.mxu0 0.0
        %1458 = vmatprep.subr.mxu0 0.0
        %1459 = vmatpush1.xpose.msra.mxu0 0.0
        %1460 = vmatprep.subr.mxu0 0.0
        %1461 = vmatpush1.xpose.msra.mxu0 0.0
        %1462 = vmatprep.subr.mxu0 0.0
        %1463 = vmatpush1.xpose.msra.mxu0 0.0
        %1464 = vmatprep.subr.mxu0 0.0
        %1465 = vmatpush1.xpose.msra.mxu0 %v1432
        %1466 = vmatprep.subr.mxu0 0.0
        %1467 = vmatpush2.xpose.msra.mxu0 0.0
        %1468 = vmatprep.subr.mxu0 0.0
        %1469 = vmatpush2.xpose.msra.mxu0 0.0
        %1470 = vmatprep.subr.mxu0 0.0
        %1471 = vmatpush2.xpose.msra.mxu0 0.0
        %1472 = vmatprep.subr.mxu0 0.0
        %1473 = vmatpush2.xpose.msra.mxu0 0.0
        %1474 = vmatprep.subr.mxu0 0.0
        %1475 = vmatpush2.xpose.msra.mxu0 0.0
        %1476 = vmatprep.subr.mxu0 0.0
        %1477 = vmatpush2.xpose.msra.mxu0 0.0
        %1478 = vmatprep.subr.mxu0 0.0
        %1479 = vmatpush2.xpose.msra.mxu0 0.0
        %1480 = vmatprep.subr.mxu0 0.0
        %1481 = vmatpush2.xpose.msra.mxu0 0.0
        %1482 = vmatprep.subr.mxu0 0.0
        %1483 = vmatpush2.xpose.msra.mxu0 0.0
        %1484 = vmatprep.subr.mxu0 0.0
        %1485 = vmatpush2.xpose.msra.mxu0 0.0
        %1486 = vmatprep.subr.mxu0 0.0
        %1487 = vmatpush2.xpose.msra.mxu0 0.0
        %1488 = vmatprep.subr.mxu0 0.0
        %1489 = vmatpush2.xpose.msra.mxu0 0.0
        %1490 = vmatprep.subr.mxu0 0.0
        %1491 = vmatpush2.xpose.msra.mxu0 0.0
        %1492 = vmatprep.subr.mxu0 0.0
        %1493 = vmatpush2.xpose.msra.mxu0 0.0
        %1494 = vmatprep.subr.mxu0 0.0
        %1495 = vmatpush2.xpose.msra.mxu0 0.0
        %1496 = vmatprep.subr.mxu0 0.0
        %1497 = vmatpush2.xpose.msra.mxu0 0.0
        %1498 = vmatprep.mubr.f32.mxu0 0.0
        %1499 = vmatmul.mubr.f32.gmra.mxu0 %v1430
        %v1500 = vpop.f32.mrf.mxu0
        %v1501 = vadd.f32 0.0, %v1500
        %v1502 = vpop.f32.mrf.mxu0
        %1503 = vdwg.mxu0
        %v1504 = vmul.f32 %v1501, 0.35355338
        %v1505 = vsel %vm418, %v1504, -inf
        %1506 = vmax.xlane.f32.xlu0 %v1505
        %v1507 = vpop.xlane.xlu0 %1506
        %v1508 = vsub.f32 %v1504, %v1507
        %v1509 = vmul.f32 %v1508, 1.442695
        %v1510 = vpow.pop %v1509
        %v1511 = vsel %vm418, %v1510, 0.0
        %1512 = vadd.xlane.f32.xlu0 %v1511
        %v1513 = vpop.xlane.xlu0 %1512
        %v1514 = vrcp.pop %v1513
        %v1515 = vmul.f32 %v1510, %v1514
        %1516 = vrot.lane.b32.xlu0 %v1424, 64
        %v1517 = vpop.permute.xlu0 %1516
        %v1520 = vsel %vm418, %v1515, 0
        %1522 = vmatprep.subr.mxu0 0.0
        %1523 = vmatpush1.msra.mxu0 0.0
        %1524 = vmatprep.subr.mxu0 0.0
        %1525 = vmatpush1.msra.mxu0 0.0
        %1526 = vmatprep.subr.mxu0 0.0
        %1527 = vmatpush1.msra.mxu0 0.0
        %1528 = vmatprep.subr.mxu0 0.0
        %1529 = vmatpush1.msra.mxu0 0.0
        %1530 = vmatprep.subr.mxu0 0.0
        %1531 = vmatpush1.msra.mxu0 0.0
        %1532 = vmatprep.subr.mxu0 0.0
        %1533 = vmatpush1.msra.mxu0 0.0
        %1534 = vmatprep.subr.mxu0 0.0
        %1535 = vmatpush1.msra.mxu0 0.0
        %1536 = vmatprep.subr.mxu0 0.0
        %1537 = vmatpush1.msra.mxu0 0.0
        %1538 = vmatprep.subr.mxu0 0.0
        %1539 = vmatpush1.msra.mxu0 0.0
        %1540 = vmatprep.subr.mxu0 0.0
        %1541 = vmatpush1.msra.mxu0 0.0
        %1542 = vmatprep.subr.mxu0 0.0
        %1543 = vmatpush1.msra.mxu0 0.0
        %1544 = vmatprep.subr.mxu0 0.0
        %1545 = vmatpush1.msra.mxu0 0.0
        %1546 = vmatprep.subr.mxu0 0.0
        %1547 = vmatpush1.msra.mxu0 0.0
        %1548 = vmatprep.subr.mxu0 0.0
        %1549 = vmatpush1.msra.mxu0 0.0
        %1550 = vmatprep.subr.mxu0 0.0
        %1551 = vmatpush1.msra.mxu0 0.0
        %1552 = vmatprep.subr.mxu0 0.0
        %1553 = vmatpush1.msra.mxu0 %v1517
        %1554 = vmatprep.subr.mxu0 0.0
        %1555 = vmatpush2.msra.mxu0 0.0
        %1556 = vmatprep.subr.mxu0 0.0
        %1557 = vmatpush2.msra.mxu0 0.0
        %1558 = vmatprep.subr.mxu0 0.0
        %1559 = vmatpush2.msra.mxu0 0.0
        %1560 = vmatprep.subr.mxu0 0.0
        %1561 = vmatpush2.msra.mxu0 0.0
        %1562 = vmatprep.subr.mxu0 0.0
        %1563 = vmatpush2.msra.mxu0 0.0
        %1564 = vmatprep.subr.mxu0 0.0
        %1565 = vmatpush2.msra.mxu0 0.0
        %1566 = vmatprep.subr.mxu0 0.0
        %1567 = vmatpush2.msra.mxu0 0.0
        %1568 = vmatprep.subr.mxu0 0.0
        %1569 = vmatpush2.msra.mxu0 0.0
        %1570 = vmatprep.subr.mxu0 0.0
        %1571 = vmatpush2.msra.mxu0 0.0
        %1572 = vmatprep.subr.mxu0 0.0
        %1573 = vmatpush2.msra.mxu0 0.0
        %1574 = vmatprep.subr.mxu0 0.0
        %1575 = vmatpush2.msra.mxu0 0.0
        %1576 = vmatprep.subr.mxu0 0.0
        %1577 = vmatpush2.msra.mxu0 0.0
        %1578 = vmatprep.subr.mxu0 0.0
        %1579 = vmatpush2.msra.mxu0 0.0
        %1580 = vmatprep.subr.mxu0 0.0
        %1581 = vmatpush2.msra.mxu0 0.0
        %1582 = vmatprep.subr.mxu0 0.0
        %1583 = vmatpush2.msra.mxu0 0.0
        %1584 = vmatprep.subr.mxu0 0.0
        %1585 = vmatpush2.msra.mxu0 0.0
        %1586 = vmatprep.mubr.f32.mxu0 0.0
        %1587 = vmatmul.mubr.f32.gmra.mxu0 %v1520
        %v1588 = vpop.f32.mrf.mxu0
        %v1589 = vadd.f32 0.0, %v1588
        %v1590 = vpop.f32.mrf.mxu0
        %1591 = vdwg.mxu0
        %1592 = vrot.lane.b32.xlu0 %v1424, 120
        %v1593 = vpop.permute.xlu0 %1592
        %1594 = vrot.lane.b32.xlu0 %v1424, 88
        %v1595 = vpop.permute.xlu0 %1594
        %v1596 = vsel %vm418, %v1593, 0
        %v1598 = vsel %vm418, %v1595, 0
        %1600 = vmatprep.subr.mxu0 0.0
        %1601 = vmatpush1.xpose.msra.mxu0 0.0
        %1602 = vmatprep.subr.mxu0 0.0
        %1603 = vmatpush1.xpose.msra.mxu0 0.0
        %1604 = vmatprep.subr.mxu0 0.0
        %1605 = vmatpush1.xpose.msra.mxu0 0.0
        %1606 = vmatprep.subr.mxu0 0.0
        %1607 = vmatpush1.xpose.msra.mxu0 0.0
        %1608 = vmatprep.subr.mxu0 0.0
        %1609 = vmatpush1.xpose.msra.mxu0 0.0
        %1610 = vmatprep.subr.mxu0 0.0
        %1611 = vmatpush1.xpose.msra.mxu0 0.0
        %1612 = vmatprep.subr.mxu0 0.0
        %1613 = vmatpush1.xpose.msra.mxu0 0.0
        %1614 = vmatprep.subr.mxu0 0.0
        %1615 = vmatpush1.xpose.msra.mxu0 0.0
        %1616 = vmatprep.subr.mxu0 0.0
        %1617 = vmatpush1.xpose.msra.mxu0 0.0
        %1618 = vmatprep.subr.mxu0 0.0
        %1619 = vmatpush1.xpose.msra.mxu0 0.0
        %1620 = vmatprep.subr.mxu0 0.0
        %1621 = vmatpush1.xpose.msra.mxu0 0.0
        %1622 = vmatprep.subr.mxu0 0.0
        %1623 = vmatpush1.xpose.msra.mxu0 0.0
        %1624 = vmatprep.subr.mxu0 0.0
        %1625 = vmatpush1.xpose.msra.mxu0 0.0
        %1626 = vmatprep.subr.mxu0 0.0
        %1627 = vmatpush1.xpose.msra.mxu0 0.0
        %1628 = vmatprep.subr.mxu0 0.0
        %1629 = vmatpush1.xpose.msra.mxu0 0.0
        %1630 = vmatprep.subr.mxu0 0.0
        %1631 = vmatpush1.xpose.msra.mxu0 %v1598
        %1632 = vmatprep.subr.mxu0 0.0
        %1633 = vmatpush2.xpose.msra.mxu0 0.0
        %1634 = vmatprep.subr.mxu0 0.0
        %1635 = vmatpush2.xpose.msra.mxu0 0.0
        %1636 = vmatprep.subr.mxu0 0.0
        %1637 = vmatpush2.xpose.msra.mxu0 0.0
        %1638 = vmatprep.subr.mxu0 0.0
        %1639 = vmatpush2.xpose.msra.mxu0 0.0
        %1640 = vmatprep.subr.mxu0 0.0
        %1641 = vmatpush2.xpose.msra.mxu0 0.0
        %1642 = vmatprep.subr.mxu0 0.0
        %1643 = vmatpush2.xpose.msra.mxu0 0.0
        %1644 = vmatprep.subr.mxu0 0.0
        %1645 = vmatpush2.xpose.msra.mxu0 0.0
        %1646 = vmatprep.subr.mxu0 0.0
        %1647 = vmatpush2.xpose.msra.mxu0 0.0
        %1648 = vmatprep.subr.mxu0 0.0
        %1649 = vmatpush2.xpose.msra.mxu0 0.0
        %1650 = vmatprep.subr.mxu0 0.0
        %1651 = vmatpush2.xpose.msra.mxu0 0.0
        %1652 = vmatprep.subr.mxu0 0.0
        %1653 = vmatpush2.xpose.msra.mxu0 0.0
        %1654 = vmatprep.subr.mxu0 0.0
        %1655 = vmatpush2.xpose.msra.mxu0 0.0
        %1656 = vmatprep.subr.mxu0 0.0
        %1657 = vmatpush2.xpose.msra.mxu0 0.0
        %1658 = vmatprep.subr.mxu0 0.0
        %1659 = vmatpush2.xpose.msra.mxu0 0.0
        %1660 = vmatprep.subr.mxu0 0.0
        %1661 = vmatpush2.xpose.msra.mxu0 0.0
        %1662 = vmatprep.subr.mxu0 0.0
        %1663 = vmatpush2.xpose.msra.mxu0 0.0
        %1664 = vmatprep.mubr.f32.mxu0 0.0
        %1665 = vmatmul.mubr.f32.gmra.mxu0 %v1596
        %v1666 = vpop.f32.mrf.mxu0
        %v1667 = vadd.f32 0.0, %v1666
        %v1668 = vpop.f32.mrf.mxu0
        %1669 = vdwg.mxu0
        %v1670 = vmul.f32 %v1667, 0.35355338
        %v1671 = vsel %vm418, %v1670, -inf
        %1672 = vmax.xlane.f32.xlu0 %v1671
        %v1673 = vpop.xlane.xlu0 %1672
        %v1674 = vsub.f32 %v1670, %v1673
        %v1675 = vmul.f32 %v1674, 1.442695
        %v1676 = vpow.pop %v1675
        %v1677 = vsel %vm418, %v1676, 0.0
        %1678 = vadd.xlane.f32.xlu0 %v1677
        %v1679 = vpop.xlane.xlu0 %1678
        %v1680 = vrcp.pop %v1679
        %v1681 = vmul.f32 %v1676, %v1680
        %1682 = vrot.lane.b32.xlu0 %v1424, 56
        %v1683 = vpop.permute.xlu0 %1682
        %v1686 = vsel %vm418, %v1681, 0
        %1688 = vmatprep.subr.mxu0 0.0
        %1689 = vmatpush1.msra.mxu0 0.0
        %1690 = vmatprep.subr.mxu0 0.0
        %1691 = vmatpush1.msra.mxu0 0.0
        %1692 = vmatprep.subr.mxu0 0.0
        %1693 = vmatpush1.msra.mxu0 0.0
        %1694 = vmatprep.subr.mxu0 0.0
        %1695 = vmatpush1.msra.mxu0 0.0
        %1696 = vmatprep.subr.mxu0 0.0
        %1697 = vmatpush1.msra.mxu0 0.0
        %1698 = vmatprep.subr.mxu0 0.0
        %1699 = vmatpush1.msra.mxu0 0.0
        %1700 = vmatprep.subr.mxu0 0.0
        %1701 = vmatpush1.msra.mxu0 0.0
        %1702 = vmatprep.subr.mxu0 0.0
        %1703 = vmatpush1.msra.mxu0 0.0
        %1704 = vmatprep.subr.mxu0 0.0
        %1705 = vmatpush1.msra.mxu0 0.0
        %1706 = vmatprep.subr.mxu0 0.0
        %1707 = vmatpush1.msra.mxu0 0.0
        %1708 = vmatprep.subr.mxu0 0.0
        %1709 = vmatpush1.msra.mxu0 0.0
        %1710 = vmatprep.subr.mxu0 0.0
        %1711 = vmatpush1.msra.mxu0 0.0
        %1712 = vmatprep.subr.mxu0 0.0
        %1713 = vmatpush1.msra.mxu0 0.0
        %1714 = vmatprep.subr.mxu0 0.0
        %1715 = vmatpush1.msra.mxu0 0.0
        %1716 = vmatprep.subr.mxu0 0.0
        %1717 = vmatpush1.msra.mxu0 0.0
        %1718 = vmatprep.subr.mxu0 0.0
        %1719 = vmatpush1.msra.mxu0 %v1683
        %1720 = vmatprep.subr.mxu0 0.0
        %1721 = vmatpush2.msra.mxu0 0.0
        %1722 = vmatprep.subr.mxu0 0.0
        %1723 = vmatpush2.msra.mxu0 0.0
        %1724 = vmatprep.subr.mxu0 0.0
        %1725 = vmatpush2.msra.mxu0 0.0
        %1726 = vmatprep.subr.mxu0 0.0
        %1727 = vmatpush2.msra.mxu0 0.0
        %1728 = vmatprep.subr.mxu0 0.0
        %1729 = vmatpush2.msra.mxu0 0.0
        %1730 = vmatprep.subr.mxu0 0.0
        %1731 = vmatpush2.msra.mxu0 0.0
        %1732 = vmatprep.subr.mxu0 0.0
        %1733 = vmatpush2.msra.mxu0 0.0
        %1734 = vmatprep.subr.mxu0 0.0
        %1735 = vmatpush2.msra.mxu0 0.0
        %1736 = vmatprep.subr.mxu0 0.0
        %1737 = vmatpush2.msra.mxu0 0.0
        %1738 = vmatprep.subr.mxu0 0.0
        %1739 = vmatpush2.msra.mxu0 0.0
        %1740 = vmatprep.subr.mxu0 0.0
        %1741 = vmatpush2.msra.mxu0 0.0
        %1742 = vmatprep.subr.mxu0 0.0
        %1743 = vmatpush2.msra.mxu0 0.0
        %1744 = vmatprep.subr.mxu0 0.0
        %1745 = vmatpush2.msra.mxu0 0.0
        %1746 = vmatprep.subr.mxu0 0.0
        %1747 = vmatpush2.msra.mxu0 0.0
        %1748 = vmatprep.subr.mxu0 0.0
        %1749 = vmatpush2.msra.mxu0 0.0
        %1750 = vmatprep.subr.mxu0 0.0
        %1751 = vmatpush2.msra.mxu0 0.0
        %1752 = vmatprep.mubr.f32.mxu0 0.0
        %1753 = vmatmul.mubr.f32.gmra.mxu0 %v1686
        %v1754 = vpop.f32.mrf.mxu0
        %v1755 = vadd.f32 0.0, %v1754
        %v1756 = vpop.f32.mrf.mxu0
        %1757 = vdwg.mxu0
        %1758 = vrot.lane.b32.xlu0 %v1424, 112
        %v1759 = vpop.permute.xlu0 %1758
        %1760 = vrot.lane.b32.xlu0 %v1424, 80
        %v1761 = vpop.permute.xlu0 %1760
        %v1762 = vsel %vm418, %v1759, 0
        %v1764 = vsel %vm418, %v1761, 0
        %1766 = vmatprep.subr.mxu0 0.0
        %1767 = vmatpush1.xpose.msra.mxu0 0.0
        %1768 = vmatprep.subr.mxu0 0.0
        %1769 = vmatpush1.xpose.msra.mxu0 0.0
        %1770 = vmatprep.subr.mxu0 0.0
        %1771 = vmatpush1.xpose.msra.mxu0 0.0
        %1772 = vmatprep.subr.mxu0 0.0
        %1773 = vmatpush1.xpose.msra.mxu0 0.0
        %1774 = vmatprep.subr.mxu0 0.0
        %1775 = vmatpush1.xpose.msra.mxu0 0.0
        %1776 = vmatprep.subr.mxu0 0.0
        %1777 = vmatpush1.xpose.msra.mxu0 0.0
        %1778 = vmatprep.subr.mxu0 0.0
        %1779 = vmatpush1.xpose.msra.mxu0 0.0
        %1780 = vmatprep.subr.mxu0 0.0
        %1781 = vmatpush1.xpose.msra.mxu0 0.0
        %1782 = vmatprep.subr.mxu0 0.0
        %1783 = vmatpush1.xpose.msra.mxu0 0.0
        %1784 = vmatprep.subr.mxu0 0.0
        %1785 = vmatpush1.xpose.msra.mxu0 0.0
        %1786 = vmatprep.subr.mxu0 0.0
        %1787 = vmatpush1.xpose.msra.mxu0 0.0
        %1788 = vmatprep.subr.mxu0 0.0
        %1789 = vmatpush1.xpose.msra.mxu0 0.0
        %1790 = vmatprep.subr.mxu0 0.0
        %1791 = vmatpush1.xpose.msra.mxu0 0.0
        %1792 = vmatprep.subr.mxu0 0.0
        %1793 = vmatpush1.xpose.msra.mxu0 0.0
        %1794 = vmatprep.subr.mxu0 0.0
        %1795 = vmatpush1.xpose.msra.mxu0 0.0
        %1796 = vmatprep.subr.mxu0 0.0
        %1797 = vmatpush1.xpose.msra.mxu0 %v1764
        %1798 = vmatprep.subr.mxu0 0.0
        %1799 = vmatpush2.xpose.msra.mxu0 0.0
        %1800 = vmatprep.subr.mxu0 0.0
        %1801 = vmatpush2.xpose.msra.mxu0 0.0
        %1802 = vmatprep.subr.mxu0 0.0
        %1803 = vmatpush2.xpose.msra.mxu0 0.0
        %1804 = vmatprep.subr.mxu0 0.0
        %1805 = vmatpush2.xpose.msra.mxu0 0.0
        %1806 = vmatprep.subr.mxu0 0.0
        %1807 = vmatpush2.xpose.msra.mxu0 0.0
        %1808 = vmatprep.subr.mxu0 0.0
        %1809 = vmatpush2.xpose.msra.mxu0 0.0
        %1810 = vmatprep.subr.mxu0 0.0
        %1811 = vmatpush2.xpose.msra.mxu0 0.0
        %1812 = vmatprep.subr.mxu0 0.0
        %1813 = vmatpush2.xpose.msra.mxu0 0.0
        %1814 = vmatprep.subr.mxu0 0.0
        %1815 = vmatpush2.xpose.msra.mxu0 0.0
        %1816 = vmatprep.subr.mxu0 0.0
        %1817 = vmatpush2.xpose.msra.mxu0 0.0
        %1818 = vmatprep.subr.mxu0 0.0
        %1819 = vmatpush2.xpose.msra.mxu0 0.0
        %1820 = vmatprep.subr.mxu0 0.0
        %1821 = vmatpush2.xpose.msra.mxu0 0.0
        %1822 = vmatprep.subr.mxu0 0.0
        %1823 = vmatpush2.xpose.msra.mxu0 0.0
        %1824 = vmatprep.subr.mxu0 0.0
        %1825 = vmatpush2.xpose.msra.mxu0 0.0
        %1826 = vmatprep.subr.mxu0 0.0
        %1827 = vmatpush2.xpose.msra.mxu0 0.0
        %1828 = vmatprep.subr.mxu0 0.0
        %1829 = vmatpush2.xpose.msra.mxu0 0.0
        %1830 = vmatprep.mubr.f32.mxu0 0.0
        %1831 = vmatmul.mubr.f32.gmra.mxu0 %v1762
        %v1832 = vpop.f32.mrf.mxu0
        %v1833 = vadd.f32 0.0, %v1832
        %v1834 = vpop.f32.mrf.mxu0
        %1835 = vdwg.mxu0
        %v1836 = vmul.f32 %v1833, 0.35355338
        %v1837 = vsel %vm418, %v1836, -inf
        %1838 = vmax.xlane.f32.xlu0 %v1837
        %v1839 = vpop.xlane.xlu0 %1838
        %v1840 = vsub.f32 %v1836, %v1839
        %v1841 = vmul.f32 %v1840, 1.442695
        %v1842 = vpow.pop %v1841
        %v1843 = vsel %vm418, %v1842, 0.0
        %1844 = vadd.xlane.f32.xlu0 %v1843
        %v1845 = vpop.xlane.xlu0 %1844
        %v1846 = vrcp.pop %v1845
        %v1847 = vmul.f32 %v1842, %v1846
        %1848 = vrot.lane.b32.xlu0 %v1424, 48
        %v1849 = vpop.permute.xlu0 %1848
        %v1852 = vsel %vm418, %v1847, 0
        %1854 = vmatprep.subr.mxu0 0.0
        %1855 = vmatpush1.msra.mxu0 0.0
        %1856 = vmatprep.subr.mxu0 0.0
        %1857 = vmatpush1.msra.mxu0 0.0
        %1858 = vmatprep.subr.mxu0 0.0
        %1859 = vmatpush1.msra.mxu0 0.0
        %1860 = vmatprep.subr.mxu0 0.0
        %1861 = vmatpush1.msra.mxu0 0.0
        %1862 = vmatprep.subr.mxu0 0.0
        %1863 = vmatpush1.msra.mxu0 0.0
        %1864 = vmatprep.subr.mxu0 0.0
        %1865 = vmatpush1.msra.mxu0 0.0
        %1866 = vmatprep.subr.mxu0 0.0
        %1867 = vmatpush1.msra.mxu0 0.0
        %1868 = vmatprep.subr.mxu0 0.0
        %1869 = vmatpush1.msra.mxu0 0.0
        %1870 = vmatprep.subr.mxu0 0.0
        %1871 = vmatpush1.msra.mxu0 0.0
        %1872 = vmatprep.subr.mxu0 0.0
        %1873 = vmatpush1.msra.mxu0 0.0
        %1874 = vmatprep.subr.mxu0 0.0
        %1875 = vmatpush1.msra.mxu0 0.0
        %1876 = vmatprep.subr.mxu0 0.0
        %1877 = vmatpush1.msra.mxu0 0.0
        %1878 = vmatprep.subr.mxu0 0.0
        %1879 = vmatpush1.msra.mxu0 0.0
        %1880 = vmatprep.subr.mxu0 0.0
        %1881 = vmatpush1.msra.mxu0 0.0
        %1882 = vmatprep.subr.mxu0 0.0
        %1883 = vmatpush1.msra.mxu0 0.0
        %1884 = vmatprep.subr.mxu0 0.0
        %1885 = vmatpush1.msra.mxu0 %v1849
        %1886 = vmatprep.subr.mxu0 0.0
        %1887 = vmatpush2.msra.mxu0 0.0
        %1888 = vmatprep.subr.mxu0 0.0
        %1889 = vmatpush2.msra.mxu0 0.0
        %1890 = vmatprep.subr.mxu0 0.0
        %1891 = vmatpush2.msra.mxu0 0.0
        %1892 = vmatprep.subr.mxu0 0.0
        %1893 = vmatpush2.msra.mxu0 0.0
        %1894 = vmatprep.subr.mxu0 0.0
        %1895 = vmatpush2.msra.mxu0 0.0
        %1896 = vmatprep.subr.mxu0 0.0
        %1897 = vmatpush2.msra.mxu0 0.0
        %1898 = vmatprep.subr.mxu0 0.0
        %1899 = vmatpush2.msra.mxu0 0.0
        %1900 = vmatprep.subr.mxu0 0.0
        %1901 = vmatpush2.msra.mxu0 0.0
        %1902 = vmatprep.subr.mxu0 0.0
        %1903 = vmatpush2.msra.mxu0 0.0
        %1904 = vmatprep.subr.mxu0 0.0
        %1905 = vmatpush2.msra.mxu0 0.0
        %1906 = vmatprep.subr.mxu0 0.0
        %1907 = vmatpush2.msra.mxu0 0.0
        %1908 = vmatprep.subr.mxu0 0.0
        %1909 = vmatpush2.msra.mxu0 0.0
        %1910 = vmatprep.subr.mxu0 0.0
        %1911 = vmatpush2.msra.mxu0 0.0
        %1912 = vmatprep.subr.mxu0 0.0
        %1913 = vmatpush2.msra.mxu0 0.0
        %1914 = vmatprep.subr.mxu0 0.0
        %1915 = vmatpush2.msra.mxu0 0.0
        %1916 = vmatprep.subr.mxu0 0.0
        %1917 = vmatpush2.msra.mxu0 0.0
        %1918 = vmatprep.mubr.f32.mxu0 0.0
        %1919 = vmatmul.mubr.f32.gmra.mxu0 %v1852
        %v1920 = vpop.f32.mrf.mxu0
        %v1921 = vadd.f32 0.0, %v1920
        %v1922 = vpop.f32.mrf.mxu0
        %1923 = vdwg.mxu0
        %1924 = vrot.lane.b32.xlu0 %v1424, 104
        %v1925 = vpop.permute.xlu0 %1924
        %1926 = vrot.lane.b32.xlu0 %v1424, 72
        %v1927 = vpop.permute.xlu0 %1926
        %v1928 = vsel %vm418, %v1925, 0
        %v1930 = vsel %vm418, %v1927, 0
        %1932 = vmatprep.subr.mxu0 0.0
        %1933 = vmatpush1.xpose.msra.mxu0 0.0
        %1934 = vmatprep.subr.mxu0 0.0
        %1935 = vmatpush1.xpose.msra.mxu0 0.0
        %1936 = vmatprep.subr.mxu0 0.0
        %1937 = vmatpush1.xpose.msra.mxu0 0.0
        %1938 = vmatprep.subr.mxu0 0.0
        %1939 = vmatpush1.xpose.msra.mxu0 0.0
        %1940 = vmatprep.subr.mxu0 0.0
        %1941 = vmatpush1.xpose.msra.mxu0 0.0
        %1942 = vmatprep.subr.mxu0 0.0
        %1943 = vmatpush1.xpose.msra.mxu0 0.0
        %1944 = vmatprep.subr.mxu0 0.0
        %1945 = vmatpush1.xpose.msra.mxu0 0.0
        %1946 = vmatprep.subr.mxu0 0.0
        %1947 = vmatpush1.xpose.msra.mxu0 0.0
        %1948 = vmatprep.subr.mxu0 0.0
        %1949 = vmatpush1.xpose.msra.mxu0 0.0
        %1950 = vmatprep.subr.mxu0 0.0
        %1951 = vmatpush1.xpose.msra.mxu0 0.0
        %1952 = vmatprep.subr.mxu0 0.0
        %1953 = vmatpush1.xpose.msra.mxu0 0.0
        %1954 = vmatprep.subr.mxu0 0.0
        %1955 = vmatpush1.xpose.msra.mxu0 0.0
        %1956 = vmatprep.subr.mxu0 0.0
        %1957 = vmatpush1.xpose.msra.mxu0 0.0
        %1958 = vmatprep.subr.mxu0 0.0
        %1959 = vmatpush1.xpose.msra.mxu0 0.0
        %1960 = vmatprep.subr.mxu0 0.0
        %1961 = vmatpush1.xpose.msra.mxu0 0.0
        %1962 = vmatprep.subr.mxu0 0.0
        %1963 = vmatpush1.xpose.msra.mxu0 %v1930
        %1964 = vmatprep.subr.mxu0 0.0
        %1965 = vmatpush2.xpose.msra.mxu0 0.0
        %1966 = vmatprep.subr.mxu0 0.0
        %1967 = vmatpush2.xpose.msra.mxu0 0.0
        %1968 = vmatprep.subr.mxu0 0.0
        %1969 = vmatpush2.xpose.msra.mxu0 0.0
        %1970 = vmatprep.subr.mxu0 0.0
        %1971 = vmatpush2.xpose.msra.mxu0 0.0
        %1972 = vmatprep.subr.mxu0 0.0
        %1973 = vmatpush2.xpose.msra.mxu0 0.0
        %1974 = vmatprep.subr.mxu0 0.0
        %1975 = vmatpush2.xpose.msra.mxu0 0.0
        %1976 = vmatprep.subr.mxu0 0.0
        %1977 = vmatpush2.xpose.msra.mxu0 0.0
        %1978 = vmatprep.subr.mxu0 0.0
        %1979 = vmatpush2.xpose.msra.mxu0 0.0
        %1980 = vmatprep.subr.mxu0 0.0
        %1981 = vmatpush2.xpose.msra.mxu0 0.0
        %1982 = vmatprep.subr.mxu0 0.0
        %1983 = vmatpush2.xpose.msra.mxu0 0.0
        %1984 = vmatprep.subr.mxu0 0.0
        %1985 = vmatpush2.xpose.msra.mxu0 0.0
        %1986 = vmatprep.subr.mxu0 0.0
        %1987 = vmatpush2.xpose.msra.mxu0 0.0
        %1988 = vmatprep.subr.mxu0 0.0
        %1989 = vmatpush2.xpose.msra.mxu0 0.0
        %1990 = vmatprep.subr.mxu0 0.0
        %1991 = vmatpush2.xpose.msra.mxu0 0.0
        %1992 = vmatprep.subr.mxu0 0.0
        %1993 = vmatpush2.xpose.msra.mxu0 0.0
        %1994 = vmatprep.subr.mxu0 0.0
        %1995 = vmatpush2.xpose.msra.mxu0 0.0
        %1996 = vmatprep.mubr.f32.mxu0 0.0
        %1997 = vmatmul.mubr.f32.gmra.mxu0 %v1928
        %v1998 = vpop.f32.mrf.mxu0
        %v1999 = vadd.f32 0.0, %v1998
        %v2000 = vpop.f32.mrf.mxu0
        %2001 = vdwg.mxu0
        %v2002 = vmul.f32 %v1999, 0.35355338
        %v2003 = vsel %vm418, %v2002, -inf
        %2004 = vmax.xlane.f32.xlu0 %v2003
        %v2005 = vpop.xlane.xlu0 %2004
        %v2006 = vsub.f32 %v2002, %v2005
        %v2007 = vmul.f32 %v2006, 1.442695
        %v2008 = vpow.pop %v2007
        %v2009 = vsel %vm418, %v2008, 0.0
        %2010 = vadd.xlane.f32.xlu0 %v2009
        %v2011 = vpop.xlane.xlu0 %2010
        %v2012 = vrcp.pop %v2011
        %v2013 = vmul.f32 %v2008, %v2012
        %2014 = vrot.lane.b32.xlu0 %v1424, 40
        %v2015 = vpop.permute.xlu0 %2014
        %v2018 = vsel %vm418, %v2013, 0
        %2020 = vmatprep.subr.mxu0 0.0
        %2021 = vmatpush1.msra.mxu0 0.0
        %2022 = vmatprep.subr.mxu0 0.0
        %2023 = vmatpush1.msra.mxu0 0.0
        %2024 = vmatprep.subr.mxu0 0.0
        %2025 = vmatpush1.msra.mxu0 0.0
        %2026 = vmatprep.subr.mxu0 0.0
        %2027 = vmatpush1.msra.mxu0 0.0
        %2028 = vmatprep.subr.mxu0 0.0
        %2029 = vmatpush1.msra.mxu0 0.0
        %2030 = vmatprep.subr.mxu0 0.0
        %2031 = vmatpush1.msra.mxu0 0.0
        %2032 = vmatprep.subr.mxu0 0.0
        %2033 = vmatpush1.msra.mxu0 0.0
        %2034 = vmatprep.subr.mxu0 0.0
        %2035 = vmatpush1.msra.mxu0 0.0
        %2036 = vmatprep.subr.mxu0 0.0
        %2037 = vmatpush1.msra.mxu0 0.0
        %2038 = vmatprep.subr.mxu0 0.0
        %2039 = vmatpush1.msra.mxu0 0.0
        %2040 = vmatprep.subr.mxu0 0.0
        %2041 = vmatpush1.msra.mxu0 0.0
        %2042 = vmatprep.subr.mxu0 0.0
        %2043 = vmatpush1.msra.mxu0 0.0
        %2044 = vmatprep.subr.mxu0 0.0
        %2045 = vmatpush1.msra.mxu0 0.0
        %2046 = vmatprep.subr.mxu0 0.0
        %2047 = vmatpush1.msra.mxu0 0.0
        %2048 = vmatprep.subr.mxu0 0.0
        %2049 = vmatpush1.msra.mxu0 0.0
        %2050 = vmatprep.subr.mxu0 0.0
        %2051 = vmatpush1.msra.mxu0 %v2015
        %2052 = vmatprep.subr.mxu0 0.0
        %2053 = vmatpush2.msra.mxu0 0.0
        %2054 = vmatprep.subr.mxu0 0.0
        %2055 = vmatpush2.msra.mxu0 0.0
        %2056 = vmatprep.subr.mxu0 0.0
        %2057 = vmatpush2.msra.mxu0 0.0
        %2058 = vmatprep.subr.mxu0 0.0
        %2059 = vmatpush2.msra.mxu0 0.0
        %2060 = vmatprep.subr.mxu0 0.0
        %2061 = vmatpush2.msra.mxu0 0.0
        %2062 = vmatprep.subr.mxu0 0.0
        %2063 = vmatpush2.msra.mxu0 0.0
        %2064 = vmatprep.subr.mxu0 0.0
        %2065 = vmatpush2.msra.mxu0 0.0
        %2066 = vmatprep.subr.mxu0 0.0
        %2067 = vmatpush2.msra.mxu0 0.0
        %2068 = vmatprep.subr.mxu0 0.0
        %2069 = vmatpush2.msra.mxu0 0.0
        %2070 = vmatprep.subr.mxu0 0.0
        %2071 = vmatpush2.msra.mxu0 0.0
        %2072 = vmatprep.subr.mxu0 0.0
        %2073 = vmatpush2.msra.mxu0 0.0
        %2074 = vmatprep.subr.mxu0 0.0
        %2075 = vmatpush2.msra.mxu0 0.0
        %2076 = vmatprep.subr.mxu0 0.0
        %2077 = vmatpush2.msra.mxu0 0.0
        %2078 = vmatprep.subr.mxu0 0.0
        %2079 = vmatpush2.msra.mxu0 0.0
        %2080 = vmatprep.subr.mxu0 0.0
        %2081 = vmatpush2.msra.mxu0 0.0
        %2082 = vmatprep.subr.mxu0 0.0
        %2083 = vmatpush2.msra.mxu0 0.0
        %2084 = vmatprep.mubr.f32.mxu0 0.0
        %2085 = vmatmul.mubr.f32.gmra.mxu0 %v2018
        %v2086 = vpop.f32.mrf.mxu0
        %v2087 = vadd.f32 0.0, %v2086
        %v2088 = vpop.f32.mrf.mxu0
        %2089 = vdwg.mxu0
        %2091 = vrot.lane.b32.xlu0 %v1755, 8
        %v2092 = vpop.permute.xlu0 %2091
        %2095 = vrot.lane.b32.xlu0 %v1921, 16
        %v2096 = vpop.permute.xlu0 %2095
        %2099 = vrot.lane.b32.xlu0 %v2087, 24
        %v2100 = vpop.permute.xlu0 %2099
        %v2102 = vsel %vm418, %v1589, %v2092
        %v2103 = vsel %vm1092, %v2102, %v2096
        %v2104 = vsel %vm1094, %v2103, %v2100
        %s2105 = scalar_lea.vmem %s2, 32
        %v2106 = vld [vmem:[%s2105] sm:$0xff]
        %v2107 = vld [vmem:[%s2105 + $0x8] sm:$0xff]
        %v2108 = vld [vmem:[%s2105 + $0x10] sm:$0xff]
        %v2109 = vld [vmem:[%s2105 + $0x18] sm:$0xff]
        %v2111 = vsel %vm341, %v2104, 0
        %2113 = vmatprep.subr.mxu0 0.0
        %2114 = vmatpush1.msra.mxu0 0.0
        %2115 = vmatprep.subr.mxu0 0.0
        %2116 = vmatpush1.msra.mxu0 0.0
        %2117 = vmatprep.subr.mxu0 0.0
        %2118 = vmatpush1.msra.mxu0 0.0
        %2119 = vmatprep.subr.mxu0 0.0
        %2120 = vmatpush1.msra.mxu0 0.0
        %2121 = vmatprep.subr.mxu0 0.0
        %2122 = vmatpush1.msra.mxu0 0.0
        %2123 = vmatprep.subr.mxu0 0.0
        %2124 = vmatpush1.msra.mxu0 0.0
        %2125 = vmatprep.subr.mxu0 0.0
        %2126 = vmatpush1.msra.mxu0 0.0
        %2127 = vmatprep.subr.mxu0 0.0
        %2128 = vmatpush1.msra.mxu0 0.0
        %2129 = vmatprep.subr.mxu0 0.0
        %2130 = vmatpush1.msra.mxu0 0.0
        %2131 = vmatprep.subr.mxu0 0.0
        %2132 = vmatpush1.msra.mxu0 0.0
        %2133 = vmatprep.subr.mxu0 0.0
        %2134 = vmatpush1.msra.mxu0 0.0
        %2135 = vmatprep.subr.mxu0 0.0
        %2136 = vmatpush1.msra.mxu0 0.0
        %2137 = vmatprep.subr.mxu0 0.0
        %2138 = vmatpush1.msra.mxu0 %v2109
        %2139 = vmatprep.subr.mxu0 0.0
        %2140 = vmatpush1.msra.mxu0 %v2108
        %2141 = vmatprep.subr.mxu0 0.0
        %2142 = vmatpush1.msra.mxu0 %v2107
        %2143 = vmatprep.subr.mxu0 0.0
        %2144 = vmatpush1.msra.mxu0 %v2106
        %2145 = vmatprep.subr.mxu0 0.0
        %2146 = vmatpush2.msra.mxu0 0.0
        %2147 = vmatprep.subr.mxu0 0.0
        %2148 = vmatpush2.msra.mxu0 0.0
        %2149 = vmatprep.subr.mxu0 0.0
        %2150 = vmatpush2.msra.mxu0 0.0
        %2151 = vmatprep.subr.mxu0 0.0
        %2152 = vmatpush2.msra.mxu0 0.0
        %2153 = vmatprep.subr.mxu0 0.0
        %2154 = vmatpush2.msra.mxu0 0.0
        %2155 = vmatprep.subr.mxu0 0.0
        %2156 = vmatpush2.msra.mxu0 0.0
        %2157 = vmatprep.subr.mxu0 0.0
        %2158 = vmatpush2.msra.mxu0 0.0
        %2159 = vmatprep.subr.mxu0 0.0
        %2160 = vmatpush2.msra.mxu0 0.0
        %2161 = vmatprep.subr.mxu0 0.0
        %2162 = vmatpush2.msra.mxu0 0.0
        %2163 = vmatprep.subr.mxu0 0.0
        %2164 = vmatpush2.msra.mxu0 0.0
        %2165 = vmatprep.subr.mxu0 0.0
        %2166 = vmatpush2.msra.mxu0 0.0
        %2167 = vmatprep.subr.mxu0 0.0
        %2168 = vmatpush2.msra.mxu0 0.0
        %2169 = vmatprep.subr.mxu0 0.0
        %2170 = vmatpush2.msra.mxu0 0.0
        %2171 = vmatprep.subr.mxu0 0.0
        %2172 = vmatpush2.msra.mxu0 0.0
        %2173 = vmatprep.subr.mxu0 0.0
        %2174 = vmatpush2.msra.mxu0 0.0
        %2175 = vmatprep.subr.mxu0 0.0
        %2176 = vmatpush2.msra.mxu0 0.0
        %2177 = vmatprep.mubr.f32.mxu0 0.0
        %2178 = vmatmul.mubr.f32.gmra.mxu0 %v2111
        %v2179 = vpop.f32.mrf.mxu0
        %v2180 = vadd.f32 0.0, %v2179
        %v2181 = vpop.f32.mrf.mxu0
        %2182 = vdwg.mxu0
        %v2183 = vadd.f32 %v1348, %v2180
        %s2184 = scalar_lea.vmem %s3, 32
        %v2185 = vld [vmem:[%s2184] sm:$0xff]
        %v2186 = vld [vmem:[%s2184 + $0x8] sm:$0xff]
        %v2187 = vld [vmem:[%s2184 + $0x10] sm:$0xff]
        %v2188 = vld [vmem:[%s2184 + $0x18] sm:$0xff]
        %s2189 = scalar_lea.vmem %s4, 1
        %v2190 = vld [vmem:[%s2189] sm:$0x1]
        %v2192 = vlaneseq
        %v2193 = vshrl.u32 %v2192, 7
        %v2194 = vsub.s32 0, %v2193
        %v2195 = vrot.slane %v2190, %v2194
        %v2198 = vsel %vm341, %v2183, 0
        %2200 = vmatprep.subr.mxu0 0.0
        %2201 = vmatpush1.msra.mxu0 0.0
        %2202 = vmatprep.subr.mxu0 0.0
        %2203 = vmatpush1.msra.mxu0 0.0
        %2204 = vmatprep.subr.mxu0 0.0
        %2205 = vmatpush1.msra.mxu0 0.0
        %2206 = vmatprep.subr.mxu0 0.0
        %2207 = vmatpush1.msra.mxu0 0.0
        %2208 = vmatprep.subr.mxu0 0.0
        %2209 = vmatpush1.msra.mxu0 0.0
        %2210 = vmatprep.subr.mxu0 0.0
        %2211 = vmatpush1.msra.mxu0 0.0
        %2212 = vmatprep.subr.mxu0 0.0
        %2213 = vmatpush1.msra.mxu0 0.0
        %2214 = vmatprep.subr.mxu0 0.0
        %2215 = vmatpush1.msra.mxu0 0.0
        %2216 = vmatprep.subr.mxu0 0.0
        %2217 = vmatpush1.msra.mxu0 0.0
        %2218 = vmatprep.subr.mxu0 0.0
        %2219 = vmatpush1.msra.mxu0 0.0
        %2220 = vmatprep.subr.mxu0 0.0
        %2221 = vmatpush1.msra.mxu0 0.0
        %2222 = vmatprep.subr.mxu0 0.0
        %2223 = vmatpush1.msra.mxu0 0.0
        %2224 = vmatprep.subr.mxu0 0.0
        %2225 = vmatpush1.msra.mxu0 %v2188
        %2226 = vmatprep.subr.mxu0 0.0
        %2227 = vmatpush1.msra.mxu0 %v2187
        %2228 = vmatprep.subr.mxu0 0.0
        %2229 = vmatpush1.msra.mxu0 %v2186
        %2230 = vmatprep.subr.mxu0 0.0
        %2231 = vmatpush1.msra.mxu0 %v2185
        %2232 = vmatprep.subr.mxu0 0.0
        %2233 = vmatpush2.msra.mxu0 0.0
        %2234 = vmatprep.subr.mxu0 0.0
        %2235 = vmatpush2.msra.mxu0 0.0
        %2236 = vmatprep.subr.mxu0 0.0
        %2237 = vmatpush2.msra.mxu0 0.0
        %2238 = vmatprep.subr.mxu0 0.0
        %2239 = vmatpush2.msra.mxu0 0.0
        %2240 = vmatprep.subr.mxu0 0.0
        %2241 = vmatpush2.msra.mxu0 0.0
        %2242 = vmatprep.subr.mxu0 0.0
        %2243 = vmatpush2.msra.mxu0 0.0
        %2244 = vmatprep.subr.mxu0 0.0
        %2245 = vmatpush2.msra.mxu0 0.0
        %2246 = vmatprep.subr.mxu0 0.0
        %2247 = vmatpush2.msra.mxu0 0.0
        %2248 = vmatprep.subr.mxu0 0.0
        %2249 = vmatpush2.msra.mxu0 0.0
        %2250 = vmatprep.subr.mxu0 0.0
        %2251 = vmatpush2.msra.mxu0 0.0
        %2252 = vmatprep.subr.mxu0 0.0
        %2253 = vmatpush2.msra.mxu0 0.0
        %2254 = vmatprep.subr.mxu0 0.0
        %2255 = vmatpush2.msra.mxu0 0.0
        %2256 = vmatprep.subr.mxu0 0.0
        %2257 = vmatpush2.msra.mxu0 0.0
        %2258 = vmatprep.subr.mxu0 0.0
        %2259 = vmatpush2.msra.mxu0 0.0
        %2260 = vmatprep.subr.mxu0 0.0
        %2261 = vmatpush2.msra.mxu0 0.0
        %2262 = vmatprep.subr.mxu0 0.0
        %2263 = vmatpush2.msra.mxu0 0.0
        %2264 = vmatprep.mubr.f32.mxu0 0.0
        %2265 = vmatmul.mubr.f32.gmra.mxu0 %v2198
        %v2266 = vpop.f32.mrf.mxu0
        %v2267 = vadd.f32 %v2195, %v2266
        %v2268 = vpop.f32.mrf.mxu0
        %2269 = vdwg.mxu0
        %v2270 = vmax.f32 %v2267, 0.0
        %s2271 = scalar_lea.vmem %s5, 64
        %v2272 = vld [vmem:[%s2271] sm:$0xff]
        %v2273 = vld [vmem:[%s2271 + $0x8] sm:$0xff]
        %v2274 = vld [vmem:[%s2271 + $0x10] sm:$0xff]
        %v2275 = vld [vmem:[%s2271 + $0x18] sm:$0xff]
        %v2276 = vld [vmem:[%s2271 + $0x20] sm:$0xff]
        %v2277 = vld [vmem:[%s2271 + $0x28] sm:$0xff]
        %v2278 = vld [vmem:[%s2271 + $0x30] sm:$0xff]
        %v2279 = vld [vmem:[%s2271 + $0x38] sm:$0xff]
        %s2280 = scalar_lea.vmem %s6, 1
        %v2281 = vld [vmem:[%s2280] sm:$0x1]
        %v2283 = vlaneseq
        %v2284 = vshrl.u32 %v2283, 7
        %v2285 = vsub.s32 0, %v2284
        %v2286 = vrot.slane %v2281, %v2285
        %v2289 = vsel %vm1274, %v2270, 0
        %2291 = vmatprep.subr.mxu0 0.0
        %2292 = vmatpush1.msra.mxu0 0.0
        %2293 = vmatprep.subr.mxu0 0.0
        %2294 = vmatpush1.msra.mxu0 0.0
        %2295 = vmatprep.subr.mxu0 0.0
        %2296 = vmatpush1.msra.mxu0 0.0
        %2297 = vmatprep.subr.mxu0 0.0
        %2298 = vmatpush1.msra.mxu0 0.0
        %2299 = vmatprep.subr.mxu0 0.0
        %2300 = vmatpush1.msra.mxu0 0.0
        %2301 = vmatprep.subr.mxu0 0.0
        %2302 = vmatpush1.msra.mxu0 0.0
        %2303 = vmatprep.subr.mxu0 0.0
        %2304 = vmatpush1.msra.mxu0 0.0
        %2305 = vmatprep.subr.mxu0 0.0
        %2306 = vmatpush1.msra.mxu0 0.0
        %2307 = vmatprep.subr.mxu0 0.0
        %2308 = vmatpush1.msra.mxu0 %v2279
        %2309 = vmatprep.subr.mxu0 0.0
        %2310 = vmatpush1.msra.mxu0 %v2278
        %2311 = vmatprep.subr.mxu0 0.0
        %2312 = vmatpush1.msra.mxu0 %v2277
        %2313 = vmatprep.subr.mxu0 0.0
        %2314 = vmatpush1.msra.mxu0 %v2276
        %2315 = vmatprep.subr.mxu0 0.0
        %2316 = vmatpush1.msra.mxu0 %v2275
        %2317 = vmatprep.subr.mxu0 0.0
        %2318 = vmatpush1.msra.mxu0 %v2274
        %2319 = vmatprep.subr.mxu0 0.0
        %2320 = vmatpush1.msra.mxu0 %v2273
        %2321 = vmatprep.subr.mxu0 0.0
        %2322 = vmatpush1.msra.mxu0 %v2272
        %2323 = vmatprep.subr.mxu0 0.0
        %2324 = vmatpush2.msra.mxu0 0.0
        %2325 = vmatprep.subr.mxu0 0.0
        %2326 = vmatpush2.msra.mxu0 0.0
        %2327 = vmatprep.subr.mxu0 0.0
        %2328 = vmatpush2.msra.mxu0 0.0
        %2329 = vmatprep.subr.mxu0 0.0
        %2330 = vmatpush2.msra.mxu0 0.0
        %2331 = vmatprep.subr.mxu0 0.0
        %2332 = vmatpush2.msra.mxu0 0.0
        %2333 = vmatprep.subr.mxu0 0.0
        %2334 = vmatpush2.msra.mxu0 0.0
        %2335 = vmatprep.subr.mxu0 0.0
        %2336 = vmatpush2.msra.mxu0 0.0
        %2337 = vmatprep.subr.mxu0 0.0
        %2338 = vmatpush2.msra.mxu0 0.0
        %2339 = vmatprep.subr.mxu0 0.0
        %2340 = vmatpush2.msra.mxu0 0.0
        %2341 = vmatprep.subr.mxu0 0.0
        %2342 = vmatpush2.msra.mxu0 0.0
        %2343 = vmatprep.subr.mxu0 0.0
        %2344 = vmatpush2.msra.mxu0 0.0
        %2345 = vmatprep.subr.mxu0 0.0
        %2346 = vmatpush2.msra.mxu0 0.0
        %2347 = vmatprep.subr.mxu0 0.0
        %2348 = vmatpush2.msra.mxu0 0.0
        %2349 = vmatprep.subr.mxu0 0.0
        %2350 = vmatpush2.msra.mxu0 0.0
        %2351 = vmatprep.subr.mxu0 0.0
        %2352 = vmatpush2.msra.mxu0 0.0
        %2353 = vmatprep.subr.mxu0 0.0
        %2354 = vmatpush2.msra.mxu0 0.0
        %2355 = vmatprep.mubr.f32.mxu0 0.0
        %2356 = vmatmul.mubr.f32.gmra.mxu0 %v2289
        %v2357 = vpop.f32.mrf.mxu0
        %v2358 = vadd.f32 %v2286, %v2357
        %v2359 = vpop.f32.mrf.mxu0
        %2360 = vdwg.mxu0
        %v2361 = vadd.f32 %v2183, %v2358
        %v2362 = vld [vmem:[#allocation5] sm:$0xff]
        %v2363 = vld [vmem:[#allocation5 + $0x8] sm:$0xff]
        %v2364 = vld [vmem:[#allocation5 + $0x10] sm:$0xff]
        %v2365 = vld [vmem:[#allocation5 + $0x18] sm:$0xff]
        %v2367 = vsel %vm341, %v2361, 0
        %2369 = vmatprep.subr.mxu0 0.0
        %2370 = vmatpush1.msra.mxu0 0.0
        %2371 = vmatprep.subr.mxu0 0.0
        %2372 = vmatpush1.msra.mxu0 0.0
        %2373 = vmatprep.subr.mxu0 0.0
        %2374 = vmatpush1.msra.mxu0 0.0
        %2375 = vmatprep.subr.mxu0 0.0
        %2376 = vmatpush1.msra.mxu0 0.0
        %2377 = vmatprep.subr.mxu0 0.0
        %2378 = vmatpush1.msra.mxu0 0.0
        %2379 = vmatprep.subr.mxu0 0.0
        %2380 = vmatpush1.msra.mxu0 0.0
        %2381 = vmatprep.subr.mxu0 0.0
        %2382 = vmatpush1.msra.mxu0 0.0
        %2383 = vmatprep.subr.mxu0 0.0
        %2384 = vmatpush1.msra.mxu0 0.0
        %2385 = vmatprep.subr.mxu0 0.0
        %2386 = vmatpush1.msra.mxu0 0.0
        %2387 = vmatprep.subr.mxu0 0.0
        %2388 = vmatpush1.msra.mxu0 0.0
        %2389 = vmatprep.subr.mxu0 0.0
        %2390 = vmatpush1.msra.mxu0 0.0
        %2391 = vmatprep.subr.mxu0 0.0
        %2392 = vmatpush1.msra.mxu0 0.0
        %2393 = vmatprep.subr.mxu0 0.0
        %2394 = vmatpush1.msra.mxu0 %v2365
        %2395 = vmatprep.subr.mxu0 0.0
        %2396 = vmatpush1.msra.mxu0 %v2364
        %2397 = vmatprep.subr.mxu0 0.0
        %2398 = vmatpush1.msra.mxu0 %v2363
        %2399 = vmatprep.subr.mxu0 0.0
        %2400 = vmatpush1.msra.mxu0 %v2362
        %2401 = vmatprep.subr.mxu0 0.0
        %2402 = vmatpush2.msra.mxu0 0.0
        %2403 = vmatprep.subr.mxu0 0.0
        %2404 = vmatpush2.msra.mxu0 0.0
        %2405 = vmatprep.subr.mxu0 0.0
        %2406 = vmatpush2.msra.mxu0 0.0
        %2407 = vmatprep.subr.mxu0 0.0
        %2408 = vmatpush2.msra.mxu0 0.0
        %2409 = vmatprep.subr.mxu0 0.0
        %2410 = vmatpush2.msra.mxu0 0.0
        %2411 = vmatprep.subr.mxu0 0.0
        %2412 = vmatpush2.msra.mxu0 0.0
        %2413 = vmatprep.subr.mxu0 0.0
        %2414 = vmatpush2.msra.mxu0 0.0
        %2415 = vmatprep.subr.mxu0 0.0
        %2416 = vmatpush2.msra.mxu0 0.0
        %2417 = vmatprep.subr.mxu0 0.0
        %2418 = vmatpush2.msra.mxu0 0.0
        %2419 = vmatprep.subr.mxu0 0.0
        %2420 = vmatpush2.msra.mxu0 0.0
        %2421 = vmatprep.subr.mxu0 0.0
        %2422 = vmatpush2.msra.mxu0 0.0
        %2423 = vmatprep.subr.mxu0 0.0
        %2424 = vmatpush2.msra.mxu0 0.0
        %2425 = vmatprep.subr.mxu0 0.0
        %2426 = vmatpush2.msra.mxu0 0.0
        %2427 = vmatprep.subr.mxu0 0.0
        %2428 = vmatpush2.msra.mxu0 0.0
        %2429 = vmatprep.subr.mxu0 0.0
        %2430 = vmatpush2.msra.mxu0 0.0
        %2431 = vmatprep.subr.mxu0 0.0
        %2432 = vmatpush2.msra.mxu0 0.0
        %2433 = vmatprep.mubr.f32.mxu0 0.0
        %2434 = vmatmul.mubr.f32.gmra.mxu0 %v2367
        %v2435 = vpop.f32.mrf.mxu0
        %v2436 = vadd.f32 0.0, %v2435
        %v2437 = vpop.f32.mrf.mxu0
        %2438 = vdwg.mxu0
        %2439 = vst [vmem:[%s335] sm:$0xff] %v2436
        %s2440 = sand.u32 %s207, 1
        %s2441 = scalar_lea.sflag [#allocation4], %s2440
        %s2442 = sand.u32 %s207, 1
        %s2443 = smul.addr %s2442, 8
        %s2444 = scalar_lea.vmem [#allocation7], %s2443
        // Predicated region
        $region61: #{tpu_custom_call.1} parent=51 // pred_check
          %p2445 = pneg %p217
        $region62: #{tpu_custom_call.1} parent=51 // pred_check_branch
          %2447 = sbr.rel (%p2445) target = $region64
        $region63: #{tpu_custom_call.1} parent=51 // pred_region
          %s2449 = ssub.s32 128, 128
          %2450 = vsyncadd %s2441, %s2449
          %s2451 = smul.addr %s26, 128
          %s2452 = scalar_lea.hbm %s8, %s2451
          %s2454 = sshll.u32 %s2444, 4
          %s2455 = int_to_ptr.vmem [resolvable:$true] %s2454
          %2457 = dma.vmem_to_hbm [thread:$0]  %s2455, 128, %s2452, %s2441
        $region64: #{tpu_custom_call.1} parent=51 // pred_fallthru
          _
      $region52: #{tpu_custom_call.1} parent=5 // pred_fallthru
        _
      %p2458 = scmp.le.s32.totalorder 2, %s21
      // Predicated region
      $region65: #{tpu_custom_call.1} parent=5 // pred_check
        %p2459 = pneg %p2458
      $region66: #{tpu_custom_call.1} parent=5 // pred_check_branch
        %2461 = sbr.rel (%p2459) target = $region68
      $region67: #{tpu_custom_call.1} parent=5 // pred_region
        %s2462 = ssub.s32 %s21, 2
        // Predicated region
        $region69: #{tpu_custom_call.1} parent=67 // pred_check
          %p2463 = pneg %p223
        $region70: #{tpu_custom_call.1} parent=67 // pred_check_branch
          %2465 = sbr.rel (%p2463) target = $region72
        $region71: #{tpu_custom_call.1} parent=67 // pred_region
          %s2466 = sand.u32 %s208, 1
          %s2467 = scalar_lea.sflag [#allocation4], %s2466
          %s2468 = sand.u32 %s208, 1
          %s2469 = smul.addr %s2468, 8
          %s2470 = scalar_lea.vmem [#allocation7], %s2469
          %2471 = dma.done %s2467, 128
        $region72: #{tpu_custom_call.1} parent=67 // pred_fallthru
          _
      $region68: #{tpu_custom_call.1} parent=5 // pred_fallthru
        _
    $region6: #{tpu_custom_call.1} parent=1 // loop_footer
      %s25 = sadd.s32 1, %s21
    $region7: #{tpu_custom_call.1} parent=1 // loop_footer_branch
      %20 = sbr.rel target = $region3
    $region8: #{tpu_custom_call.1} parent=1 // loop_exit
      _
    %2472 = vsyncpa [#allocation3], 1
    %s2473 = scalar_lea.sflag [#allocation3], 1
    %2474 = vsyncpa %s2473, 1
    %2475 = vsyncpa [#allocation6], 1
    %2476 = vsyncpa [#allocation4], 1
    %s2477 = scalar_lea.sflag [#allocation4], 1
    %2478 = vsyncpa %s2477, 1

</llo_original>
